<compile_context>
chip_gen: v5e
topology: v5e:2x2
jax: 0.10.0
libtpu: 0.0.40
codegen_flags: <defaults>
</compile_context>

<pallas_src>
import jax
import jax.numpy as jnp
from jax.experimental import pallas as pl
from jax.experimental.pallas import tpu as pltpu

LEAKY_SLOPE = 0.01  # torch.nn.LeakyReLU default


# ---------------------------------------------------------------------------
# Pallas kernel wrapper
# ---------------------------------------------------------------------------
def encoder_forward(x_ncl, convs, n_layers):
    """x_ncl: (N, data_dim, L) like the PyTorch module.

    convs: list of (weight, bias) in torch layout (C_out, C_in, k), in execution order:
           [conv1(k=6), conv2(k=3), res0.conv1, res0.conv2, ..., conv3, conv4, conv5].
    Returns (N, 4*latent_dim, L // 4) float32, matching EncoderNet.forward.
    """
    N, data_dim, L = x_ncl.shape
    L1 = L // 2          # after maxpool1
    L2 = L1 // 2         # after maxpool2
    num_convs = len(convs)
    assert num_convs == 5 + 2 * n_layers

    latent = convs[0][0].shape[0]
    c_final = convs[-1][0].shape[0]          # 4 * latent

    # --- channels-last weight re-layout: (C_out, C_in, k) -> (C_in, k*C_out), taps
    #     concatenated along the output columns so the conv is ONE matmul per layer.
    fused = []
    meta = []   # (k, pad_left, c_out) per conv
    for w, b in convs:
        c_out, c_in, k = w.shape
        wf = jnp.transpose(w, (1, 2, 0)).reshape(c_in, k * c_out).astype(jnp.float32)
        fused.append((wf, b.reshape(1, c_out).astype(jnp.float32)))
        meta.append((k, (k - 1) // 2, c_out))   # torch 'same': left = (k-1)//2

    # tiny input relayout NCL -> NLC (data_dim channels only; negligible vs activations)
    x_nlc = jnp.transpose(x_ncl, (0, 2, 1)).astype(jnp.float32)

    # ------------------------------------------------------------------ kernel
    def kernel(*refs):
        x_ref = refs[0]
        wb_refs = refs[1:1 + 2 * num_convs]
        out_ref = refs[1 + 2 * num_convs]
        pool1_ref = refs[2 + 2 * num_convs]     # (L,  latent)
        pool2_ref = refs[3 + 2 * num_convs]     # (L1, 2*latent)

        def conv_same(h, idx):
            """Conv1d with torch 'same' zero padding, channels-last, f32 accumulation."""
            k, pad_left, c_out = meta[idx]
            w_ref = wb_refs[2 * idx]
            b_ref = wb_refs[2 * idx + 1]
            Lc = h.shape[0]
            width = k * c_out
            # one fused-tap MXU matmul: (Lc, C_in) @ (C_in, k*C_out)
            p = jnp.dot(h, w_ref[...], preferred_element_type=jnp.float32)
            # zero-pad along L once, then accumulate the k shifted tap slices
            ppad = jnp.concatenate(
                [jnp.zeros((pad_left, width), jnp.float32),
                 p,
                 jnp.zeros((k - 1 - pad_left, width), jnp.float32)], axis=0)
            acc = None
            for j in range(k):
                tap = ppad[j:j + Lc, j * c_out:(j + 1) * c_out]
                acc = tap if acc is None else acc + tap
            return acc + b_ref[...]

        def maxpool2(h, buf_ref):
            """MaxPool1d(kernel_size=2, stride=2) via strided VMEM reads."""
            Lc = h.shape[0]
            Lh = Lc // 2
            buf_ref[...] = h
            even = buf_ref[pl.ds(0, Lh, 2), :]
            odd = buf_ref[pl.ds(1, Lh, 2), :]
            return jnp.maximum(even, odd)

        def relu(v):
            return jnp.maximum(v, 0.0)

        def lrelu(v):
            return jnp.maximum(v, LEAKY_SLOPE * v)

        h = x_ref[...].astype(jnp.float32)                 # (L, data_dim)
        h = maxpool2(relu(conv_same(h, 0)), pool1_ref)     # (L//2, latent)
        h = maxpool2(relu(conv_same(h, 1)), pool2_ref)     # (L//4, 2*latent)

        li = 2
        for _ in range(n_layers):                          # ResBlocks
            r = conv_same(lrelu(h), li); li += 1
            r = conv_same(lrelu(r), li); li += 1
            h = h + r

        h = relu(conv_same(h, li)); li += 1                # conv3 -> (L//4, 4*latent)
        h = relu(conv_same(h, li)); li += 1                # conv4
        h = relu(conv_same(h, li)); li += 1                # conv5
        out_ref[...] = h.astype(out_ref.dtype)             # lane-dense (L//4, 128) store

    # ------------------------------------------------------------ pallas_call
    in_specs = [pl.BlockSpec((None, L, data_dim), lambda n: (n, 0, 0))]
    args = [x_nlc]
    for wf, b2 in fused:
        in_specs.append(pl.BlockSpec(wf.shape, lambda n: (0, 0)))   # weights resident
        in_specs.append(pl.BlockSpec(b2.shape, lambda n: (0, 0)))
        args.append(wf)
        args.append(b2)

    out_nlc = pl.pallas_call(
        kernel,
        grid=(N,),
        in_specs=in_specs,
        out_specs=pl.BlockSpec((None, L2, c_final), lambda n: (n, 0, 0)),
        out_shape=jax.ShapeDtypeStruct((N, L2, c_final), jnp.float32),
        scratch_shapes=[
            pltpu.VMEM((L, latent), jnp.float32),        # maxpool1 staging
            pltpu.VMEM((L1, 2 * latent), jnp.float32),   # maxpool2 staging
        ],
        compiler_params=pltpu.CompilerParams(
            dimension_semantics=("parallel",),           # 2 TCs on v7x; free on v5e/v6e
            vmem_limit_bytes=32 * 1024 * 1024,           # safe on v7x's 64 MiB VMEM
        ),
    )(*args)

    # final relayout back to the PyTorch NCL contract (small: length already / 4)
    return jnp.transpose(out_nlc, (0, 2, 1))


# ---------------------------------------------------------------------------
# Pure-JAX reference (torch semantics, NCL layout) for correctness checking
# ---------------------------------------------------------------------------
def _ref_conv_same(x, w, b):
    k = w.shape[2]
    total = k - 1
    left = total // 2
    right = total - left
    xp = jnp.pad(x, ((0, 0), (0, 0), (left, right)))
    L = x.shape[-1]
    out = sum(jnp.einsum('ncl,oc->nol', xp[:, :, j:j + L], w[:, :, j],
                         precision=jax.lax.Precision.HIGHEST) for j in range(k))
    return out + b[None, :, None]


def _ref_maxpool2(x):
    N, C, L = x.shape
    L2 = L // 2
    return jnp.max(x[:, :, :2 * L2].reshape(N, C, L2, 2), axis=-1)


def reference_forward(x, convs, n_layers):
    relu = lambda v: jnp.maximum(v, 0.0)
    lrelu = lambda v: jnp.where(v > 0, v, LEAKY_SLOPE * v)
    idx = 0
    x = _ref_maxpool2(relu(_ref_conv_same(x, *convs[idx]))); idx += 1
    x = _ref_maxpool2(relu(_ref_conv_same(x, *convs[idx]))); idx += 1
    for _ in range(n_layers):
        y = _ref_conv_same(lrelu(x), *convs[idx]); idx += 1
        y = _ref_conv_same(lrelu(y), *convs[idx]); idx += 1
        x = x + y
    x = relu(_ref_conv_same(x, *convs[idx])); idx += 1
    x = relu(_ref_conv_same(x, *convs[idx])); idx += 1
    x = relu(_ref_conv_same(x, *convs[idx])); idx += 1
    return x


# ---------------------------------------------------------------------------
if __name__ == "__main__":
    data_dim, latent_dim, n_layers = 4, 32, 2
    N, L = 2, 16

    key = jax.random.PRNGKey(0)
    n_convs = 5 + 2 * n_layers
    keys = jax.random.split(key, n_convs + 1)

    x = jax.random.normal(keys[0], (N, data_dim, L), dtype=jnp.float32)

    def mkconv(k_, c_out, c_in, ksz):
        kw, kb = jax.random.split(k_)
        w = 0.1 * jax.random.normal(kw, (c_out, c_in, ksz), dtype=jnp.float32)
        b = 0.1 * jax.random.normal(kb, (c_out,), dtype=jnp.float32)
        return w, b

    convs = []
    ki = 1
    convs.append(mkconv(keys[ki], latent_dim, data_dim, 6)); ki += 1
    convs.append(mkconv(keys[ki], 2 * latent_dim, latent_dim, 3)); ki += 1
    for _ in range(n_layers):
        convs.append(mkconv(keys[ki], 2 * latent_dim, 2 * latent_dim, 3)); ki += 1
        convs.append(mkconv(keys[ki], 2 * latent_dim, 2 * latent_dim, 3)); ki += 1
    convs.append(mkconv(keys[ki], 4 * latent_dim, 2 * latent_dim, 3)); ki += 1
    convs.append(mkconv(keys[ki], 4 * latent_dim, 4 * latent_dim, 3)); ki += 1
    convs.append(mkconv(keys[ki], 4 * latent_dim, 4 * latent_dim, 3)); ki += 1

    out = encoder_forward(x, convs, n_layers)
    out = jax.block_until_ready(out)

    ref = reference_forward(x, convs, n_layers)
    assert out.shape == (N, 4 * latent_dim, L // 4), out.shape
    max_err = float(jnp.max(jnp.abs(out - ref)))
    assert jnp.allclose(out, ref, rtol=1e-2, atol=1e-2), f"mismatch vs reference, max abs err {max_err}"

    print("KERNEL_OK")
</pallas_src>

<mosaic_0001>
module attributes {stable_mosaic.version = 11 : i64} {
  func.func @kernel(%arg0: i32, %arg1: memref<1x16x4xf32, #tpu.memory_space<vmem>>, %arg2: memref<4x192xf32, #tpu.memory_space<vmem>>, %arg3: memref<1x32xf32, #tpu.memory_space<vmem>>, %arg4: memref<32x192xf32, #tpu.memory_space<vmem>>, %arg5: memref<1x64xf32, #tpu.memory_space<vmem>>, %arg6: memref<64x192xf32, #tpu.memory_space<vmem>>, %arg7: memref<1x64xf32, #tpu.memory_space<vmem>>, %arg8: memref<64x192xf32, #tpu.memory_space<vmem>>, %arg9: memref<1x64xf32, #tpu.memory_space<vmem>>, %arg10: memref<64x192xf32, #tpu.memory_space<vmem>>, %arg11: memref<1x64xf32, #tpu.memory_space<vmem>>, %arg12: memref<64x192xf32, #tpu.memory_space<vmem>>, %arg13: memref<1x64xf32, #tpu.memory_space<vmem>>, %arg14: memref<64x384xf32, #tpu.memory_space<vmem>>, %arg15: memref<1x128xf32, #tpu.memory_space<vmem>>, %arg16: memref<128x384xf32, #tpu.memory_space<vmem>>, %arg17: memref<1x128xf32, #tpu.memory_space<vmem>>, %arg18: memref<128x384xf32, #tpu.memory_space<vmem>>, %arg19: memref<1x128xf32, #tpu.memory_space<vmem>>, %arg20: memref<1x4x128xf32, #tpu.memory_space<vmem>>, %arg21: memref<16x32xf32, #tpu.memory_space<vmem>>, %arg22: memref<8x64xf32, #tpu.memory_space<vmem>>) attributes {dimension_semantics = [#tpu.dimension_semantics<parallel>], iteration_bounds = array<i64: 2>, scalar_prefetch = 0 : i64, scratch_operands = 2 : i64, tpu.core_type = #tpu.core_type<tc>, window_params = [{transform_indices = @transform_0, window_bounds = array<i64: 1, 16, 4>}, {pipeline_mode = #tpu.pipeline_mode<synchronous>, transform_indices = @transform_1, window_bounds = array<i64: 4, 192>}, {pipeline_mode = #tpu.pipeline_mode<synchronous>, transform_indices = @transform_2, window_bounds = array<i64: 1, 32>}, {pipeline_mode = #tpu.pipeline_mode<synchronous>, transform_indices = @transform_3, window_bounds = array<i64: 32, 192>}, {pipeline_mode = #tpu.pipeline_mode<synchronous>, transform_indices = @transform_4, window_bounds = array<i64: 1, 64>}, {pipeline_mode = #tpu.pipeline_mode<synchronous>, transform_indices = @transform_5, window_bounds = array<i64: 64, 192>}, {pipeline_mode = #tpu.pipeline_mode<synchronous>, transform_indices = @transform_6, window_bounds = array<i64: 1, 64>}, {pipeline_mode = #tpu.pipeline_mode<synchronous>, transform_indices = @transform_7, window_bounds = array<i64: 64, 192>}, {pipeline_mode = #tpu.pipeline_mode<synchronous>, transform_indices = @transform_8, window_bounds = array<i64: 1, 64>}, {pipeline_mode = #tpu.pipeline_mode<synchronous>, transform_indices = @transform_9, window_bounds = array<i64: 64, 192>}, {pipeline_mode = #tpu.pipeline_mode<synchronous>, transform_indices = @transform_10, window_bounds = array<i64: 1, 64>}, {pipeline_mode = #tpu.pipeline_mode<synchronous>, transform_indices = @transform_11, window_bounds = array<i64: 64, 192>}, {pipeline_mode = #tpu.pipeline_mode<synchronous>, transform_indices = @transform_12, window_bounds = array<i64: 1, 64>}, {pipeline_mode = #tpu.pipeline_mode<synchronous>, transform_indices = @transform_13, window_bounds = array<i64: 64, 384>}, {pipeline_mode = #tpu.pipeline_mode<synchronous>, transform_indices = @transform_14, window_bounds = array<i64: 1, 128>}, {pipeline_mode = #tpu.pipeline_mode<synchronous>, transform_indices = @transform_15, window_bounds = array<i64: 128, 384>}, {pipeline_mode = #tpu.pipeline_mode<synchronous>, transform_indices = @transform_16, window_bounds = array<i64: 1, 128>}, {pipeline_mode = #tpu.pipeline_mode<synchronous>, transform_indices = @transform_17, window_bounds = array<i64: 128, 384>}, {pipeline_mode = #tpu.pipeline_mode<synchronous>, transform_indices = @transform_18, window_bounds = array<i64: 1, 128>}, {transform_indices = @transform_19, window_bounds = array<i64: 1, 4, 128>}]} {
    %c0 = arith.constant 0 : index
    %c0_0 = arith.constant 0 : index
    %c0_1 = arith.constant 0 : index
    %0 = vector.load %arg1[%c0, %c0_0, %c0_1] : memref<1x16x4xf32, #tpu.memory_space<vmem>>, vector<1x16x4xf32>
    %1 = vector.shape_cast %0 : vector<1x16x4xf32> to vector<16x4xf32>
    %c0_2 = arith.constant 0 : index
    %c0_3 = arith.constant 0 : index
    %2 = vector.load %arg2[%c0_2, %c0_3] : memref<4x192xf32, #tpu.memory_space<vmem>>, vector<4x192xf32>
    %cst = arith.constant dense<0.000000e+00> : vector<16x192xf32>
    %3 = tpu.matmul %1, %2, %cst {dimension_numbers = #tpu.dot_dimension_numbers<[1], [0], [0], [1], [0, 0, 1, 1], [], []>} : vector<16x4xf32>, vector<4x192xf32>, vector<16x192xf32> -> vector<16x192xf32>
    %cst_4 = arith.constant 0.000000e+00 : f32
    %4 = vector.broadcast %cst_4 : f32 to vector<2x192xf32>
    %cst_5 = arith.constant 0.000000e+00 : f32
    %5 = vector.broadcast %cst_5 : f32 to vector<3x192xf32>
    %6 = tpu.concatenate %4, %3, %5 in 0 : vector<2x192xf32>, vector<16x192xf32>, vector<3x192xf32> -> vector<21x192xf32>
    %7 = vector.extract_strided_slice %6 {offsets = [0, 0], sizes = [16, 32], strides = [1, 1]} : vector<21x192xf32> to vector<16x32xf32>
    %8 = vector.extract_strided_slice %6 {offsets = [1, 32], sizes = [16, 32], strides = [1, 1]} : vector<21x192xf32> to vector<16x32xf32>
    %9 = arith.addf %7, %8 : vector<16x32xf32>
    %10 = vector.extract_strided_slice %6 {offsets = [2, 64], sizes = [16, 32], strides = [1, 1]} : vector<21x192xf32> to vector<16x32xf32>
    %11 = arith.addf %9, %10 : vector<16x32xf32>
    %12 = vector.extract_strided_slice %6 {offsets = [3, 96], sizes = [16, 32], strides = [1, 1]} : vector<21x192xf32> to vector<16x32xf32>
    %13 = arith.addf %11, %12 : vector<16x32xf32>
    %14 = vector.extract_strided_slice %6 {offsets = [4, 128], sizes = [16, 32], strides = [1, 1]} : vector<21x192xf32> to vector<16x32xf32>
    %15 = arith.addf %13, %14 : vector<16x32xf32>
    %16 = vector.extract_strided_slice %6 {offsets = [5, 160], sizes = [16, 32], strides = [1, 1]} : vector<21x192xf32> to vector<16x32xf32>
    %17 = arith.addf %15, %16 : vector<16x32xf32>
    %c0_6 = arith.constant 0 : index
    %c0_7 = arith.constant 0 : index
    %18 = vector.load %arg3[%c0_6, %c0_7] : memref<1x32xf32, #tpu.memory_space<vmem>>, vector<1x32xf32>
    %19 = vector.broadcast %18 : vector<1x32xf32> to vector<16x32xf32>
    %20 = arith.addf %17, %19 : vector<16x32xf32>
    %cst_8 = arith.constant 0.000000e+00 : f32
    %21 = vector.broadcast %cst_8 : f32 to vector<16x32xf32>
    %22 = arith.maximumf %20, %21 : vector<16x32xf32>
    %c0_9 = arith.constant 0 : index
    %c0_10 = arith.constant 0 : index
    %23 = vector.load %arg21[%c0_9, %c0_10] : memref<16x32xf32, #tpu.memory_space<vmem>>, vector<16x32xf32>
    tpu.vector_store %arg21[%c0_9, %c0_10], %22 {strides = array<i32>} : memref<16x32xf32, #tpu.memory_space<vmem>>, vector<16x32xf32>,
    %c0_11 = arith.constant 0 : index
    %c0_12 = arith.constant 0 : index
    %24 = tpu.strided_load %arg21[%c0_11, %c0_12] {strides = array<i32: 2, 1>} : memref<16x32xf32, #tpu.memory_space<vmem>>, vector<8x32xf32>
    %c1 = arith.constant 1 : index
    %c0_13 = arith.constant 0 : index
    %25 = tpu.strided_load %arg21[%c1, %c0_13] {strides = array<i32: 2, 1>} : memref<16x32xf32, #tpu.memory_space<vmem>>, vector<8x32xf32>
    %26 = arith.maximumf %24, %25 : vector<8x32xf32>
    %c0_14 = arith.constant 0 : index
    %c0_15 = arith.constant 0 : index
    %27 = vector.load %arg4[%c0_14, %c0_15] : memref<32x192xf32, #tpu.memory_space<vmem>>, vector<32x192xf32>
    %cst_16 = arith.constant dense<0.000000e+00> : vector<8x192xf32>
    %28 = tpu.matmul %26, %27, %cst_16 {dimension_numbers = #tpu.dot_dimension_numbers<[1], [0], [0], [1], [0, 0, 1, 1], [], []>} : vector<8x32xf32>, vector<32x192xf32>, vector<8x192xf32> -> vector<8x192xf32>
    %cst_17 = arith.constant 0.000000e+00 : f32
    %29 = vector.broadcast %cst_17 : f32 to vector<1x192xf32>
    %cst_18 = arith.constant 0.000000e+00 : f32
    %30 = vector.broadcast %cst_18 : f32 to vector<1x192xf32>
    %31 = tpu.concatenate %29, %28, %30 in 0 : vector<1x192xf32>, vector<8x192xf32>, vector<1x192xf32> -> vector<10x192xf32>
    %32 = vector.extract_strided_slice %31 {offsets = [0, 0], sizes = [8, 64], strides = [1, 1]} : vector<10x192xf32> to vector<8x64xf32>
    %33 = vector.extract_strided_slice %31 {offsets = [1, 64], sizes = [8, 64], strides = [1, 1]} : vector<10x192xf32> to vector<8x64xf32>
    %34 = arith.addf %32, %33 : vector<8x64xf32>
    %35 = vector.extract_strided_slice %31 {offsets = [2, 128], sizes = [8, 64], strides = [1, 1]} : vector<10x192xf32> to vector<8x64xf32>
    %36 = arith.addf %34, %35 : vector<8x64xf32>
    %c0_19 = arith.constant 0 : index
    %c0_20 = arith.constant 0 : index
    %37 = vector.load %arg5[%c0_19, %c0_20] : memref<1x64xf32, #tpu.memory_space<vmem>>, vector<1x64xf32>
    %38 = vector.broadcast %37 : vector<1x64xf32> to vector<8x64xf32>
    %39 = arith.addf %36, %38 : vector<8x64xf32>
    %cst_21 = arith.constant 0.000000e+00 : f32
    %40 = vector.broadcast %cst_21 : f32 to vector<8x64xf32>
    %41 = arith.maximumf %39, %40 : vector<8x64xf32>
    %c0_22 = arith.constant 0 : index
    %c0_23 = arith.constant 0 : index
    %42 = vector.load %arg22[%c0_22, %c0_23] : memref<8x64xf32, #tpu.memory_space<vmem>>, vector<8x64xf32>
    tpu.vector_store %arg22[%c0_22, %c0_23], %41 {strides = array<i32>} : memref<8x64xf32, #tpu.memory_space<vmem>>, vector<8x64xf32>,
    %c0_24 = arith.constant 0 : index
    %c0_25 = arith.constant 0 : index
    %43 = tpu.strided_load %arg22[%c0_24, %c0_25] {strides = array<i32: 2, 1>} : memref<8x64xf32, #tpu.memory_space<vmem>>, vector<4x64xf32>
    %c1_26 = arith.constant 1 : index
    %c0_27 = arith.constant 0 : index
    %44 = tpu.strided_load %arg22[%c1_26, %c0_27] {strides = array<i32: 2, 1>} : memref<8x64xf32, #tpu.memory_space<vmem>>, vector<4x64xf32>
    %45 = arith.maximumf %43, %44 : vector<4x64xf32>
    %cst_28 = arith.constant 0.00999999977 : f32
    %46 = vector.broadcast %cst_28 : f32 to vector<4x64xf32>
    %47 = arith.mulf %46, %45 : vector<4x64xf32>
    %48 = arith.maximumf %45, %47 : vector<4x64xf32>
    %c0_29 = arith.constant 0 : index
    %c0_30 = arith.constant 0 : index
    %49 = vector.load %arg6[%c0_29, %c0_30] : memref<64x192xf32, #tpu.memory_space<vmem>>, vector<64x192xf32>
    %cst_31 = arith.constant dense<0.000000e+00> : vector<4x192xf32>
    %50 = tpu.matmul %48, %49, %cst_31 {dimension_numbers = #tpu.dot_dimension_numbers<[1], [0], [0], [1], [0, 0, 1, 1], [], []>} : vector<4x64xf32>, vector<64x192xf32>, vector<4x192xf32> -> vector<4x192xf32>
    %cst_32 = arith.constant 0.000000e+00 : f32
    %51 = vector.broadcast %cst_32 : f32 to vector<1x192xf32>
    %cst_33 = arith.constant 0.000000e+00 : f32
    %52 = vector.broadcast %cst_33 : f32 to vector<1x192xf32>
    %53 = tpu.concatenate %51, %50, %52 in 0 : vector<1x192xf32>, vector<4x192xf32>, vector<1x192xf32> -> vector<6x192xf32>
    %54 = vector.extract_strided_slice %53 {offsets = [0, 0], sizes = [4, 64], strides = [1, 1]} : vector<6x192xf32> to vector<4x64xf32>
    %55 = vector.extract_strided_slice %53 {offsets = [1, 64], sizes = [4, 64], strides = [1, 1]} : vector<6x192xf32> to vector<4x64xf32>
    %56 = arith.addf %54, %55 : vector<4x64xf32>
    %57 = vector.extract_strided_slice %53 {offsets = [2, 128], sizes = [4, 64], strides = [1, 1]} : vector<6x192xf32> to vector<4x64xf32>
    %58 = arith.addf %56, %57 : vector<4x64xf32>
    %c0_34 = arith.constant 0 : index
    %c0_35 = arith.constant 0 : index
    %59 = vector.load %arg7[%c0_34, %c0_35] : memref<1x64xf32, #tpu.memory_space<vmem>>, vector<1x64xf32>
    %60 = vector.broadcast %59 : vector<1x64xf32> to vector<4x64xf32>
    %61 = arith.addf %58, %60 : vector<4x64xf32>
    %cst_36 = arith.constant 0.00999999977 : f32
    %62 = vector.broadcast %cst_36 : f32 to vector<4x64xf32>
    %63 = arith.mulf %62, %61 : vector<4x64xf32>
    %64 = arith.maximumf %61, %63 : vector<4x64xf32>
    %c0_37 = arith.constant 0 : index
    %c0_38 = arith.constant 0 : index
    %65 = vector.load %arg8[%c0_37, %c0_38] : memref<64x192xf32, #tpu.memory_space<vmem>>, vector<64x192xf32>
    %cst_39 = arith.constant dense<0.000000e+00> : vector<4x192xf32>
    %66 = tpu.matmul %64, %65, %cst_39 {dimension_numbers = #tpu.dot_dimension_numbers<[1], [0], [0], [1], [0, 0, 1, 1], [], []>} : vector<4x64xf32>, vector<64x192xf32>, vector<4x192xf32> -> vector<4x192xf32>
    %cst_40 = arith.constant 0.000000e+00 : f32
    %67 = vector.broadcast %cst_40 : f32 to vector<1x192xf32>
    %cst_41 = arith.constant 0.000000e+00 : f32
    %68 = vector.broadcast %cst_41 : f32 to vector<1x192xf32>
    %69 = tpu.concatenate %67, %66, %68 in 0 : vector<1x192xf32>, vector<4x192xf32>, vector<1x192xf32> -> vector<6x192xf32>
    %70 = vector.extract_strided_slice %69 {offsets = [0, 0], sizes = [4, 64], strides = [1, 1]} : vector<6x192xf32> to vector<4x64xf32>
    %71 = vector.extract_strided_slice %69 {offsets = [1, 64], sizes = [4, 64], strides = [1, 1]} : vector<6x192xf32> to vector<4x64xf32>
    %72 = arith.addf %70, %71 : vector<4x64xf32>
    %73 = vector.extract_strided_slice %69 {offsets = [2, 128], sizes = [4, 64], strides = [1, 1]} : vector<6x192xf32> to vector<4x64xf32>
    %74 = arith.addf %72, %73 : vector<4x64xf32>
    %c0_42 = arith.constant 0 : index
    %c0_43 = arith.constant 0 : index
    %75 = vector.load %arg9[%c0_42, %c0_43] : memref<1x64xf32, #tpu.memory_space<vmem>>, vector<1x64xf32>
    %76 = vector.broadcast %75 : vector<1x64xf32> to vector<4x64xf32>
    %77 = arith.addf %74, %76 : vector<4x64xf32>
    %78 = arith.addf %45, %77 : vector<4x64xf32>
    %cst_44 = arith.constant 0.00999999977 : f32
    %79 = vector.broadcast %cst_44 : f32 to vector<4x64xf32>
    %80 = arith.mulf %79, %78 : vector<4x64xf32>
    %81 = arith.maximumf %78, %80 : vector<4x64xf32>
    %c0_45 = arith.constant 0 : index
    %c0_46 = arith.constant 0 : index
    %82 = vector.load %arg10[%c0_45, %c0_46] : memref<64x192xf32, #tpu.memory_space<vmem>>, vector<64x192xf32>
    %cst_47 = arith.constant dense<0.000000e+00> : vector<4x192xf32>
    %83 = tpu.matmul %81, %82, %cst_47 {dimension_numbers = #tpu.dot_dimension_numbers<[1], [0], [0], [1], [0, 0, 1, 1], [], []>} : vector<4x64xf32>, vector<64x192xf32>, vector<4x192xf32> -> vector<4x192xf32>
    %cst_48 = arith.constant 0.000000e+00 : f32
    %84 = vector.broadcast %cst_48 : f32 to vector<1x192xf32>
    %cst_49 = arith.constant 0.000000e+00 : f32
    %85 = vector.broadcast %cst_49 : f32 to vector<1x192xf32>
    %86 = tpu.concatenate %84, %83, %85 in 0 : vector<1x192xf32>, vector<4x192xf32>, vector<1x192xf32> -> vector<6x192xf32>
    %87 = vector.extract_strided_slice %86 {offsets = [0, 0], sizes = [4, 64], strides = [1, 1]} : vector<6x192xf32> to vector<4x64xf32>
    %88 = vector.extract_strided_slice %86 {offsets = [1, 64], sizes = [4, 64], strides = [1, 1]} : vector<6x192xf32> to vector<4x64xf32>
    %89 = arith.addf %87, %88 : vector<4x64xf32>
    %90 = vector.extract_strided_slice %86 {offsets = [2, 128], sizes = [4, 64], strides = [1, 1]} : vector<6x192xf32> to vector<4x64xf32>
    %91 = arith.addf %89, %90 : vector<4x64xf32>
    %c0_50 = arith.constant 0 : index
    %c0_51 = arith.constant 0 : index
    %92 = vector.load %arg11[%c0_50, %c0_51] : memref<1x64xf32, #tpu.memory_space<vmem>>, vector<1x64xf32>
    %93 = vector.broadcast %92 : vector<1x64xf32> to vector<4x64xf32>
    %94 = arith.addf %91, %93 : vector<4x64xf32>
    %cst_52 = arith.constant 0.00999999977 : f32
    %95 = vector.broadcast %cst_52 : f32 to vector<4x64xf32>
    %96 = arith.mulf %95, %94 : vector<4x64xf32>
    %97 = arith.maximumf %94, %96 : vector<4x64xf32>
    %c0_53 = arith.constant 0 : index
    %c0_54 = arith.constant 0 : index
    %98 = vector.load %arg12[%c0_53, %c0_54] : memref<64x192xf32, #tpu.memory_space<vmem>>, vector<64x192xf32>
    %cst_55 = arith.constant dense<0.000000e+00> : vector<4x192xf32>
    %99 = tpu.matmul %97, %98, %cst_55 {dimension_numbers = #tpu.dot_dimension_numbers<[1], [0], [0], [1], [0, 0, 1, 1], [], []>} : vector<4x64xf32>, vector<64x192xf32>, vector<4x192xf32> -> vector<4x192xf32>
    %cst_56 = arith.constant 0.000000e+00 : f32
    %100 = vector.broadcast %cst_56 : f32 to vector<1x192xf32>
    %cst_57 = arith.constant 0.000000e+00 : f32
    %101 = vector.broadcast %cst_57 : f32 to vector<1x192xf32>
    %102 = tpu.concatenate %100, %99, %101 in 0 : vector<1x192xf32>, vector<4x192xf32>, vector<1x192xf32> -> vector<6x192xf32>
    %103 = vector.extract_strided_slice %102 {offsets = [0, 0], sizes = [4, 64], strides = [1, 1]} : vector<6x192xf32> to vector<4x64xf32>
    %104 = vector.extract_strided_slice %102 {offsets = [1, 64], sizes = [4, 64], strides = [1, 1]} : vector<6x192xf32> to vector<4x64xf32>
    %105 = arith.addf %103, %104 : vector<4x64xf32>
    %106 = vector.extract_strided_slice %102 {offsets = [2, 128], sizes = [4, 64], strides = [1, 1]} : vector<6x192xf32> to vector<4x64xf32>
    %107 = arith.addf %105, %106 : vector<4x64xf32>
    %c0_58 = arith.constant 0 : index
    %c0_59 = arith.constant 0 : index
    %108 = vector.load %arg13[%c0_58, %c0_59] : memref<1x64xf32, #tpu.memory_space<vmem>>, vector<1x64xf32>
    %109 = vector.broadcast %108 : vector<1x64xf32> to vector<4x64xf32>
    %110 = arith.addf %107, %109 : vector<4x64xf32>
    %111 = arith.addf %78, %110 : vector<4x64xf32>
    %c0_60 = arith.constant 0 : index
    %c0_61 = arith.constant 0 : index
    %112 = vector.load %arg14[%c0_60, %c0_61] : memref<64x384xf32, #tpu.memory_space<vmem>>, vector<64x384xf32>
    %cst_62 = arith.constant dense<0.000000e+00> : vector<4x384xf32>
    %113 = tpu.matmul %111, %112, %cst_62 {dimension_numbers = #tpu.dot_dimension_numbers<[1], [0], [0], [1], [0, 0, 1, 1], [], []>} : vector<4x64xf32>, vector<64x384xf32>, vector<4x384xf32> -> vector<4x384xf32>
    %cst_63 = arith.constant 0.000000e+00 : f32
    %114 = vector.broadcast %cst_63 : f32 to vector<1x384xf32>
    %cst_64 = arith.constant 0.000000e+00 : f32
    %115 = vector.broadcast %cst_64 : f32 to vector<1x384xf32>
    %116 = tpu.concatenate %114, %113, %115 in 0 : vector<1x384xf32>, vector<4x384xf32>, vector<1x384xf32> -> vector<6x384xf32>
    %117 = vector.extract_strided_slice %116 {offsets = [0, 0], sizes = [4, 128], strides = [1, 1]} : vector<6x384xf32> to vector<4x128xf32>
    %118 = vector.extract_strided_slice %116 {offsets = [1, 128], sizes = [4, 128], strides = [1, 1]} : vector<6x384xf32> to vector<4x128xf32>
    %119 = arith.addf %117, %118 : vector<4x128xf32>
    %120 = vector.extract_strided_slice %116 {offsets = [2, 256], sizes = [4, 128], strides = [1, 1]} : vector<6x384xf32> to vector<4x128xf32>
    %121 = arith.addf %119, %120 : vector<4x128xf32>
    %c0_65 = arith.constant 0 : index
    %c0_66 = arith.constant 0 : index
    %122 = vector.load %arg15[%c0_65, %c0_66] : memref<1x128xf32, #tpu.memory_space<vmem>>, vector<1x128xf32>
    %123 = vector.broadcast %122 : vector<1x128xf32> to vector<4x128xf32>
    %124 = arith.addf %121, %123 : vector<4x128xf32>
    %cst_67 = arith.constant 0.000000e+00 : f32
    %125 = vector.broadcast %cst_67 : f32 to vector<4x128xf32>
    %126 = arith.maximumf %124, %125 : vector<4x128xf32>
    %c0_68 = arith.constant 0 : index
    %c0_69 = arith.constant 0 : index
    %127 = vector.load %arg16[%c0_68, %c0_69] : memref<128x384xf32, #tpu.memory_space<vmem>>, vector<128x384xf32>
    %cst_70 = arith.constant dense<0.000000e+00> : vector<4x384xf32>
    %128 = tpu.matmul %126, %127, %cst_70 {dimension_numbers = #tpu.dot_dimension_numbers<[1], [0], [0], [1], [0, 0, 1, 1], [], []>} : vector<4x128xf32>, vector<128x384xf32>, vector<4x384xf32> -> vector<4x384xf32>
    %cst_71 = arith.constant 0.000000e+00 : f32
    %129 = vector.broadcast %cst_71 : f32 to vector<1x384xf32>
    %cst_72 = arith.constant 0.000000e+00 : f32
    %130 = vector.broadcast %cst_72 : f32 to vector<1x384xf32>
    %131 = tpu.concatenate %129, %128, %130 in 0 : vector<1x384xf32>, vector<4x384xf32>, vector<1x384xf32> -> vector<6x384xf32>
    %132 = vector.extract_strided_slice %131 {offsets = [0, 0], sizes = [4, 128], strides = [1, 1]} : vector<6x384xf32> to vector<4x128xf32>
    %133 = vector.extract_strided_slice %131 {offsets = [1, 128], sizes = [4, 128], strides = [1, 1]} : vector<6x384xf32> to vector<4x128xf32>
    %134 = arith.addf %132, %133 : vector<4x128xf32>
    %135 = vector.extract_strided_slice %131 {offsets = [2, 256], sizes = [4, 128], strides = [1, 1]} : vector<6x384xf32> to vector<4x128xf32>
    %136 = arith.addf %134, %135 : vector<4x128xf32>
    %c0_73 = arith.constant 0 : index
    %c0_74 = arith.constant 0 : index
    %137 = vector.load %arg17[%c0_73, %c0_74] : memref<1x128xf32, #tpu.memory_space<vmem>>, vector<1x128xf32>
    %138 = vector.broadcast %137 : vector<1x128xf32> to vector<4x128xf32>
    %139 = arith.addf %136, %138 : vector<4x128xf32>
    %cst_75 = arith.constant 0.000000e+00 : f32
    %140 = vector.broadcast %cst_75 : f32 to vector<4x128xf32>
    %141 = arith.maximumf %139, %140 : vector<4x128xf32>
    %c0_76 = arith.constant 0 : index
    %c0_77 = arith.constant 0 : index
    %142 = vector.load %arg18[%c0_76, %c0_77] : memref<128x384xf32, #tpu.memory_space<vmem>>, vector<128x384xf32>
    %cst_78 = arith.constant dense<0.000000e+00> : vector<4x384xf32>
    %143 = tpu.matmul %141, %142, %cst_78 {dimension_numbers = #tpu.dot_dimension_numbers<[1], [0], [0], [1], [0, 0, 1, 1], [], []>} : vector<4x128xf32>, vector<128x384xf32>, vector<4x384xf32> -> vector<4x384xf32>
    %cst_79 = arith.constant 0.000000e+00 : f32
    %144 = vector.broadcast %cst_79 : f32 to vector<1x384xf32>
    %cst_80 = arith.constant 0.000000e+00 : f32
    %145 = vector.broadcast %cst_80 : f32 to vector<1x384xf32>
    %146 = tpu.concatenate %144, %143, %145 in 0 : vector<1x384xf32>, vector<4x384xf32>, vector<1x384xf32> -> vector<6x384xf32>
    %147 = vector.extract_strided_slice %146 {offsets = [0, 0], sizes = [4, 128], strides = [1, 1]} : vector<6x384xf32> to vector<4x128xf32>
    %148 = vector.extract_strided_slice %146 {offsets = [1, 128], sizes = [4, 128], strides = [1, 1]} : vector<6x384xf32> to vector<4x128xf32>
    %149 = arith.addf %147, %148 : vector<4x128xf32>
    %150 = vector.extract_strided_slice %146 {offsets = [2, 256], sizes = [4, 128], strides = [1, 1]} : vector<6x384xf32> to vector<4x128xf32>
    %151 = arith.addf %149, %150 : vector<4x128xf32>
    %c0_81 = arith.constant 0 : index
    %c0_82 = arith.constant 0 : index
    %152 = vector.load %arg19[%c0_81, %c0_82] : memref<1x128xf32, #tpu.memory_space<vmem>>, vector<1x128xf32>
    %153 = vector.broadcast %152 : vector<1x128xf32> to vector<4x128xf32>
    %154 = arith.addf %151, %153 : vector<4x128xf32>
    %cst_83 = arith.constant 0.000000e+00 : f32
    %155 = vector.broadcast %cst_83 : f32 to vector<4x128xf32>
    %156 = arith.maximumf %154, %155 : vector<4x128xf32>
    %c0_84 = arith.constant 0 : index
    %c0_85 = arith.constant 0 : index
    %c0_86 = arith.constant 0 : index
    %157 = vector.load %arg20[%c0_84, %c0_85, %c0_86] : memref<1x4x128xf32, #tpu.memory_space<vmem>>, vector<1x4x128xf32>
    %158 = vector.shape_cast %157 : vector<1x4x128xf32> to vector<4x128xf32>
    %159 = vector.shape_cast %156 : vector<4x128xf32> to vector<1x4x128xf32>
    tpu.vector_store %arg20[%c0_84, %c0_85, %c0_86], %159 {strides = array<i32>} : memref<1x4x128xf32, #tpu.memory_space<vmem>>, vector<1x4x128xf32>,
    return
  }
  func.func @transform_0(%arg0: i32) -> (i32, i32, i32) {
    %c0_i32 = arith.constant 0 : i32
    %c0_i32_0 = arith.constant 0 : i32
    %c0_i32_1 = arith.constant 0 : i32
    return %arg0, %c0_i32, %c0_i32_0 : i32, i32, i32
  }
  func.func @transform_1(%arg0: i32) -> (i32, i32) {
    %c0_i32 = arith.constant 0 : i32
    %c0_i32_0 = arith.constant 0 : i32
    %c0_i32_1 = arith.constant 0 : i32
    return %c0_i32, %c0_i32_0 : i32, i32
  }
  func.func @transform_2(%arg0: i32) -> (i32, i32) {
    %c0_i32 = arith.constant 0 : i32
    %c0_i32_0 = arith.constant 0 : i32
    %c0_i32_1 = arith.constant 0 : i32
    return %c0_i32, %c0_i32_0 : i32, i32
  }
  func.func @transform_3(%arg0: i32) -> (i32, i32) {
    %c0_i32 = arith.constant 0 : i32
    %c0_i32_0 = arith.constant 0 : i32
    %c0_i32_1 = arith.constant 0 : i32
    return %c0_i32, %c0_i32_0 : i32, i32
  }
  func.func @transform_4(%arg0: i32) -> (i32, i32) {
    %c0_i32 = arith.constant 0 : i32
    %c0_i32_0 = arith.constant 0 : i32
    %c0_i32_1 = arith.constant 0 : i32
    return %c0_i32, %c0_i32_0 : i32, i32
  }
  func.func @transform_5(%arg0: i32) -> (i32, i32) {
    %c0_i32 = arith.constant 0 : i32
    %c0_i32_0 = arith.constant 0 : i32
    %c0_i32_1 = arith.constant 0 : i32
    return %c0_i32, %c0_i32_0 : i32, i32
  }
  func.func @transform_6(%arg0: i32) -> (i32, i32) {
    %c0_i32 = arith.constant 0 : i32
    %c0_i32_0 = arith.constant 0 : i32
    %c0_i32_1 = arith.constant 0 : i32
    return %c0_i32, %c0_i32_0 : i32, i32
  }
  func.func @transform_7(%arg0: i32) -> (i32, i32) {
    %c0_i32 = arith.constant 0 : i32
    %c0_i32_0 = arith.constant 0 : i32
    %c0_i32_1 = arith.constant 0 : i32
    return %c0_i32, %c0_i32_0 : i32, i32
  }
  func.func @transform_8(%arg0: i32) -> (i32, i32) {
    %c0_i32 = arith.constant 0 : i32
    %c0_i32_0 = arith.constant 0 : i32
    %c0_i32_1 = arith.constant 0 : i32
    return %c0_i32, %c0_i32_0 : i32, i32
  }
  func.func @transform_9(%arg0: i32) -> (i32, i32) {
    %c0_i32 = arith.constant 0 : i32
    %c0_i32_0 = arith.constant 0 : i32
    %c0_i32_1 = arith.constant 0 : i32
    return %c0_i32, %c0_i32_0 : i32, i32
  }
  func.func @transform_10(%arg0: i32) -> (i32, i32) {
    %c0_i32 = arith.constant 0 : i32
    %c0_i32_0 = arith.constant 0 : i32
    %c0_i32_1 = arith.constant 0 : i32
    return %c0_i32, %c0_i32_0 : i32, i32
  }
  func.func @transform_11(%arg0: i32) -> (i32, i32) {
    %c0_i32 = arith.constant 0 : i32
    %c0_i32_0 = arith.constant 0 : i32
    %c0_i32_1 = arith.constant 0 : i32
    return %c0_i32, %c0_i32_0 : i32, i32
  }
  func.func @transform_12(%arg0: i32) -> (i32, i32) {
    %c0_i32 = arith.constant 0 : i32
    %c0_i32_0 = arith.constant 0 : i32
    %c0_i32_1 = arith.constant 0 : i32
    return %c0_i32, %c0_i32_0 : i32, i32
  }
  func.func @transform_13(%arg0: i32) -> (i32, i32) {
    %c0_i32 = arith.constant 0 : i32
    %c0_i32_0 = arith.constant 0 : i32
    %c0_i32_1 = arith.constant 0 : i32
    return %c0_i32, %c0_i32_0 : i32, i32
  }
  func.func @transform_14(%arg0: i32) -> (i32, i32) {
    %c0_i32 = arith.constant 0 : i32
    %c0_i32_0 = arith.constant 0 : i32
    %c0_i32_1 = arith.constant 0 : i32
    return %c0_i32, %c0_i32_0 : i32, i32
  }
  func.func @transform_15(%arg0: i32) -> (i32, i32) {
    %c0_i32 = arith.constant 0 : i32
    %c0_i32_0 = arith.constant 0 : i32
    %c0_i32_1 = arith.constant 0 : i32
    return %c0_i32, %c0_i32_0 : i32, i32
  }
  func.func @transform_16(%arg0: i32) -> (i32, i32) {
    %c0_i32 = arith.constant 0 : i32
    %c0_i32_0 = arith.constant 0 : i32
    %c0_i32_1 = arith.constant 0 : i32
    return %c0_i32, %c0_i32_0 : i32, i32
  }
  func.func @transform_17(%arg0: i32) -> (i32, i32) {
    %c0_i32 = arith.constant 0 : i32
    %c0_i32_0 = arith.constant 0 : i32
    %c0_i32_1 = arith.constant 0 : i32
    return %c0_i32, %c0_i32_0 : i32, i32
  }
  func.func @transform_18(%arg0: i32) -> (i32, i32) {
    %c0_i32 = arith.constant 0 : i32
    %c0_i32_0 = arith.constant 0 : i32
    %c0_i32_1 = arith.constant 0 : i32
    return %c0_i32, %c0_i32_0 : i32, i32
  }
  func.func @transform_19(%arg0: i32) -> (i32, i32, i32) {
    %c0_i32 = arith.constant 0 : i32
    %c0_i32_0 = arith.constant 0 : i32
    %c0_i32_1 = arith.constant 0 : i32
    return %arg0, %c0_i32, %c0_i32_0 : i32, i32, i32
  }
}

</mosaic_0001>

<llo_original>
// kernel: tpu_custom_call.1
$region0: #{tpu_custom_call.1}
  #allocation0 [shape = 'u32[]', space=smem, size = 0x4, offset = 0x4, fixed_abs, tag = 'smem constant byte address 0x4 - core index']
  #allocation1 [shape = 'u32[72,128]{1,0:T(1,128)}', space=vmem, size = 0x9000, scoped, tag = 'internal scratch']
  #allocation2 [shape = 'f32[16,32]{1,0:T(8,128)}', space=vmem, size = 0x2000, scoped, tag = 'scratch operand']
  #allocation3 [shape = 'f32[8,64]{1,0:T(8,128)}', space=vmem, size = 0x1000, scoped, tag = 'scratch operand']
  %s0 = inlined_call_operand.vmem [shape: f32[2,16,4], index: 0, kind: input, shape index: {}]
  %s1 = inlined_call_operand.vmem [shape: f32[4,192], index: 1, kind: input, shape index: {}]
  %s2 = inlined_call_operand.vmem [shape: f32[1,32], index: 2, kind: input, shape index: {}]
  %s3 = inlined_call_operand.hbm [shape: f32[32,192], index: 3, kind: input, shape index: {}]
  %s4 = inlined_call_operand.vmem [shape: f32[1,64], index: 4, kind: input, shape index: {}]
  %s5 = inlined_call_operand.hbm [shape: f32[64,192], index: 5, kind: input, shape index: {}]
  %s6 = inlined_call_operand.vmem [shape: f32[1,64], index: 6, kind: input, shape index: {}]
  %s7 = inlined_call_operand.hbm [shape: f32[64,192], index: 7, kind: input, shape index: {}]
  %s8 = inlined_call_operand.vmem [shape: f32[1,64], index: 8, kind: input, shape index: {}]
  %s9 = inlined_call_operand.hbm [shape: f32[64,192], index: 9, kind: input, shape index: {}]
  %s10 = inlined_call_operand.vmem [shape: f32[1,64], index: 10, kind: input, shape index: {}]
  %s11 = inlined_call_operand.hbm [shape: f32[64,192], index: 11, kind: input, shape index: {}]
  %s12 = inlined_call_operand.vmem [shape: f32[1,64], index: 12, kind: input, shape index: {}]
  %s13 = inlined_call_operand.hbm [shape: f32[64,384], index: 13, kind: input, shape index: {}]
  %s14 = inlined_call_operand.vmem [shape: f32[1,128], index: 14, kind: input, shape index: {}]
  %s15 = inlined_call_operand.hbm [shape: f32[128,384], index: 15, kind: input, shape index: {}]
  %s16 = inlined_call_operand.vmem [shape: f32[1,128], index: 16, kind: input, shape index: {}]
  %s17 = inlined_call_operand.hbm [shape: f32[128,384], index: 17, kind: input, shape index: {}]
  %s18 = inlined_call_operand.vmem [shape: f32[1,128], index: 18, kind: input, shape index: {}]
  %s19 = inlined_call_operand.hbm [shape: f32[2,4,128], index: 19, kind: output, shape index: {}]
  %s20 = sld [smem:[#allocation0]]
  $region141: #{tpu_custom_call.1} parent=0
    _
  %s22 = ssub.s32 1, %s20
  %s23 = scalar_select 0, %s22, %s20
  $region1: #{tpu_custom_call.1} parent=0
    #allocation4 [shape = 'u8[32768]{0}', space=vmem, size = 0x8000, scoped, tag = 'input window, operand 3, single buffered']
    #allocation5 [shape = 's32[2]{0}', space=sflag, size = 0x8, scoped, tag = 'scoped memory for tpu_custom_call.1']
    #allocation6 [shape = 's32[2]{0}', space=sflag, size = 0x8, scoped, tag = 'scoped memory for tpu_custom_call.1']
    #allocation7 [shape = 'u8[65536]{0}', space=vmem, size = 0x10000, scoped, tag = 'input window, operand 5, single buffered']
    #allocation8 [shape = 's32[1]{0}', space=sflag, size = 0x4, scoped, tag = 'scoped memory for tpu_custom_call.1']
    #allocation9 [shape = 'u8[65536]{0}', space=vmem, size = 0x10000, scoped, tag = 'input window, operand 7, single buffered']
    #allocation10 [shape = 'u8[65536]{0}', space=vmem, size = 0x10000, scoped, tag = 'input window, operand 9, single buffered']
    #allocation11 [shape = 's32[1]{0}', space=sflag, size = 0x4, scoped, tag = 'scoped memory for tpu_custom_call.1']
    #allocation12 [shape = 'u8[65536]{0}', space=vmem, size = 0x10000, scoped, tag = 'input window, operand 11, single buffered']
    #allocation13 [shape = 'u8[98304]{0}', space=vmem, size = 0x18000, scoped, tag = 'input window, operand 13, single buffered']
    #allocation14 [shape = 's32[1]{0}', space=sflag, size = 0x4, scoped, tag = 'scoped memory for tpu_custom_call.1']
    #allocation15 [shape = 'u8[196608]{0}', space=vmem, size = 0x30000, scoped, tag = 'input window, operand 15, single buffered']
    #allocation16 [shape = 'u8[196608]{0}', space=vmem, size = 0x30000, scoped, tag = 'input window, operand 17, single buffered']
    #allocation17 [shape = 's32[1]{0}', space=sflag, size = 0x4, scoped, tag = 'scoped memory for tpu_custom_call.1']
    #allocation18 [shape = 'u8[4096]{0}', space=vmem, size = 0x1000, scoped, tag = 'output window, operand 0']
    %24 = vsyncpa [#allocation5], 0
    %25 = vsyncpa [#allocation8], 0
    %26 = vsyncpa [#allocation11], 0
    %27 = vsyncpa [#allocation14], 0
    %28 = vsyncpa [#allocation17], 0
    %29 = vsyncpa [#allocation6], 0
    %s30 = scalar_lea.sflag [#allocation6], 1
    %31 = vsyncpa %s30, 0
    loop: start=0, step=1, limit=4
    $region2: #{tpu_custom_call.1} parent=1 // loop_pre_header
      _
    $region3: #{tpu_custom_call.1} parent=1 // loop_header
      %s33 = sphi 0, %s37
      %p34 = scmp.ge.s32.totalorder %s33, 4
      %s43 = sphi 0, %s45
      %s46 = sphi 0, %s43
      %s47 = sphi 0, %s46
      %s63 = sphi 0, %s47
      %s67 = sphi 0, %s67
      %s69 = sphi 0, %s67
      %s70 = sphi 0, %s69
      %s84 = sphi 0, %s70
      %s88 = sphi 0, %s88
      %s90 = sphi 0, %s88
      %s91 = sphi 0, %s90
      %s105 = sphi 0, %s91
      %s109 = sphi 0, %s109
      %s111 = sphi 0, %s109
      %s112 = sphi 0, %s111
      %s126 = sphi 0, %s112
      %s130 = sphi 0, %s130
      %s132 = sphi 0, %s130
      %s133 = sphi 0, %s132
      %s147 = sphi 0, %s133
      %s151 = sphi 0, %s151
      %s153 = sphi 0, %s151
      %s154 = sphi 0, %s153
      %s168 = sphi 0, %s154
      %s172 = sphi 0, %s172
      %s174 = sphi 0, %s172
      %s175 = sphi 0, %s174
      %s189 = sphi 0, %s175
      %s193 = sphi 0, %s193
      %s195 = sphi 0, %s193
      %s196 = sphi 0, %s195
      %s210 = sphi 0, %s196
      %s214 = sphi 0, %s214
      %s216 = sphi 0, %s214
      %s217 = sphi 0, %s216
      %s231 = sphi 0, %s217
      %s235 = sphi 0, %s235
      %s237 = sphi 0, %s235
      %s238 = sphi 0, %s237
      %s252 = sphi 0, %s238
      %s256 = sphi 0, %s256
      %s258 = sphi 0, %s256
      %s259 = sphi 0, %s258
      %s273 = sphi 0, %s259
      %s277 = sphi 0, %s277
      %s279 = sphi 0, %s277
      %s280 = sphi 0, %s279
      %s294 = sphi 0, %s280
      %s298 = sphi 0, %s298
      %s300 = sphi 0, %s298
      %s301 = sphi 0, %s300
      %s315 = sphi 0, %s301
      %s319 = sphi 0, %s319
      %s321 = sphi 0, %s319
      %s322 = sphi 0, %s321
      %s336 = sphi 0, %s322
      %s340 = sphi 0, %s340
      %s342 = sphi 0, %s340
      %s343 = sphi 0, %s342
      %s357 = sphi 0, %s343
      %s361 = sphi 0, %s361
      %s363 = sphi 0, %s361
      %s364 = sphi 0, %s363
      %s378 = sphi 0, %s364
      %s382 = sphi 0, %s382
      %s384 = sphi 0, %s382
      %s385 = sphi 0, %s384
      %s399 = sphi 0, %s385
      %s403 = sphi 0, %s403
      %s405 = sphi 0, %s403
      %s406 = sphi 0, %s405
      %s420 = sphi 0, %s406
      %s424 = sphi 0, %s424
      %s426 = sphi 0, %s424
      %s427 = sphi 0, %s426
      %s441 = sphi 0, %s427
      %s447 = sphi 0, %s449
      %s450 = sphi 0, %s447
      %s451 = sphi 0, %s450
      %s467 = sphi 0, %s451
    $region4: #{tpu_custom_call.1} parent=1 // loop_header_branch
      %36 = sbr.rel (%p34) target = $region8
    $region5: #{tpu_custom_call.1} parent=1 // loop_body
      %s38 = ssub.s32 %s33, 1
      %s39 = ssub.s32 %s33, 2
      %s40 = sadd.s32 %s33, 1
      %s41 = ssub.s32 %s33, %s40
      %p42 = scmp.eq.s32.totalorder %s41, 0
      %s44 = sadd.s32 %s43, 1
      %s45 = scalar_select %p42, %s43, %s44
      %p48 = pneg %p42
      %p49 = scmp.eq.s32.totalorder %s33, 1
      %p50 = por %p48, %p49
      %p51 = scmp.ne.s32.totalorder %s43, %s46
      %p52 = scmp.eq.s32.totalorder %s33, 0
      %p53 = por %p51, %p52
      %p54 = scmp.ne.s32.totalorder %s43, %s46
      %p55 = scmp.eq.s32.totalorder %s38, 1
      %p56 = por %p54, %p55
      %p57 = scmp.ne.s32.totalorder %s46, %s47
      %p58 = scmp.eq.s32.totalorder %s38, 0
      %p59 = por %p57, %p58
      %p60 = scmp.ne.s32.totalorder %s46, %s47
      %p61 = scmp.eq.s32.totalorder %s39, 1
      %p62 = por %p60, %p61
      %p64 = scmp.ne.s32.totalorder %s47, %s63
      %p65 = scmp.eq.s32.totalorder %s39, 0
      %p66 = por %p64, %p65
      %s68 = sadd.s32 %s67, 1
      %p71 = scmp.eq.s32.totalorder %s33, 1
      %p72 = scmp.ne.s32.totalorder %s67, %s69
      %p73 = scmp.eq.s32.totalorder %s33, 0
      %p74 = por %p72, %p73
      %p75 = scmp.ne.s32.totalorder %s67, %s69
      %p76 = scmp.eq.s32.totalorder %s38, 1
      %p77 = por %p75, %p76
      %p78 = scmp.ne.s32.totalorder %s69, %s70
      %p79 = scmp.eq.s32.totalorder %s38, 0
      %p80 = por %p78, %p79
      %p81 = scmp.ne.s32.totalorder %s69, %s70
      %p82 = scmp.eq.s32.totalorder %s39, 1
      %p83 = por %p81, %p82
      %p85 = scmp.ne.s32.totalorder %s70, %s84
      %p86 = scmp.eq.s32.totalorder %s39, 0
      %p87 = por %p85, %p86
      %s89 = sadd.s32 %s88, 1
      %p92 = scmp.eq.s32.totalorder %s33, 1
      %p93 = scmp.ne.s32.totalorder %s88, %s90
      %p94 = scmp.eq.s32.totalorder %s33, 0
      %p95 = por %p93, %p94
      %p96 = scmp.ne.s32.totalorder %s88, %s90
      %p97 = scmp.eq.s32.totalorder %s38, 1
      %p98 = por %p96, %p97
      %p99 = scmp.ne.s32.totalorder %s90, %s91
      %p100 = scmp.eq.s32.totalorder %s38, 0
      %p101 = por %p99, %p100
      %p102 = scmp.ne.s32.totalorder %s90, %s91
      %p103 = scmp.eq.s32.totalorder %s39, 1
      %p104 = por %p102, %p103
      %p106 = scmp.ne.s32.totalorder %s91, %s105
      %p107 = scmp.eq.s32.totalorder %s39, 0
      %p108 = por %p106, %p107
      %s110 = sadd.s32 %s109, 1
      %p113 = scmp.eq.s32.totalorder %s33, 1
      %p114 = scmp.ne.s32.totalorder %s109, %s111
      %p115 = scmp.eq.s32.totalorder %s33, 0
      %p116 = por %p114, %p115
      %p117 = scmp.ne.s32.totalorder %s109, %s111
      %p118 = scmp.eq.s32.totalorder %s38, 1
      %p119 = por %p117, %p118
      %p120 = scmp.ne.s32.totalorder %s111, %s112
      %p121 = scmp.eq.s32.totalorder %s38, 0
      %p122 = por %p120, %p121
      %p123 = scmp.ne.s32.totalorder %s111, %s112
      %p124 = scmp.eq.s32.totalorder %s39, 1
      %p125 = por %p123, %p124
      %p127 = scmp.ne.s32.totalorder %s112, %s126
      %p128 = scmp.eq.s32.totalorder %s39, 0
      %p129 = por %p127, %p128
      %s131 = sadd.s32 %s130, 1
      %p134 = scmp.eq.s32.totalorder %s33, 1
      %p135 = scmp.ne.s32.totalorder %s130, %s132
      %p136 = scmp.eq.s32.totalorder %s33, 0
      %p137 = por %p135, %p136
      %p138 = scmp.ne.s32.totalorder %s130, %s132
      %p139 = scmp.eq.s32.totalorder %s38, 1
      %p140 = por %p138, %p139
      %p141 = scmp.ne.s32.totalorder %s132, %s133
      %p142 = scmp.eq.s32.totalorder %s38, 0
      %p143 = por %p141, %p142
      %p144 = scmp.ne.s32.totalorder %s132, %s133
      %p145 = scmp.eq.s32.totalorder %s39, 1
      %p146 = por %p144, %p145
      %p148 = scmp.ne.s32.totalorder %s133, %s147
      %p149 = scmp.eq.s32.totalorder %s39, 0
      %p150 = por %p148, %p149
      %s152 = sadd.s32 %s151, 1
      %p155 = scmp.eq.s32.totalorder %s33, 1
      %p156 = scmp.ne.s32.totalorder %s151, %s153
      %p157 = scmp.eq.s32.totalorder %s33, 0
      %p158 = por %p156, %p157
      %p159 = scmp.ne.s32.totalorder %s151, %s153
      %p160 = scmp.eq.s32.totalorder %s38, 1
      %p161 = por %p159, %p160
      %p162 = scmp.ne.s32.totalorder %s153, %s154
      %p163 = scmp.eq.s32.totalorder %s38, 0
      %p164 = por %p162, %p163
      %p165 = scmp.ne.s32.totalorder %s153, %s154
      %p166 = scmp.eq.s32.totalorder %s39, 1
      %p167 = por %p165, %p166
      %p169 = scmp.ne.s32.totalorder %s154, %s168
      %p170 = scmp.eq.s32.totalorder %s39, 0
      %p171 = por %p169, %p170
      %s173 = sadd.s32 %s172, 1
      %p176 = scmp.eq.s32.totalorder %s33, 1
      %p177 = scmp.ne.s32.totalorder %s172, %s174
      %p178 = scmp.eq.s32.totalorder %s33, 0
      %p179 = por %p177, %p178
      %p180 = scmp.ne.s32.totalorder %s172, %s174
      %p181 = scmp.eq.s32.totalorder %s38, 1
      %p182 = por %p180, %p181
      %p183 = scmp.ne.s32.totalorder %s174, %s175
      %p184 = scmp.eq.s32.totalorder %s38, 0
      %p185 = por %p183, %p184
      %p186 = scmp.ne.s32.totalorder %s174, %s175
      %p187 = scmp.eq.s32.totalorder %s39, 1
      %p188 = por %p186, %p187
      %p190 = scmp.ne.s32.totalorder %s175, %s189
      %p191 = scmp.eq.s32.totalorder %s39, 0
      %p192 = por %p190, %p191
      %s194 = sadd.s32 %s193, 1
      %p197 = scmp.eq.s32.totalorder %s33, 1
      %p198 = scmp.ne.s32.totalorder %s193, %s195
      %p199 = scmp.eq.s32.totalorder %s33, 0
      %p200 = por %p198, %p199
      %p201 = scmp.ne.s32.totalorder %s193, %s195
      %p202 = scmp.eq.s32.totalorder %s38, 1
      %p203 = por %p201, %p202
      %p204 = scmp.ne.s32.totalorder %s195, %s196
      %p205 = scmp.eq.s32.totalorder %s38, 0
      %p206 = por %p204, %p205
      %p207 = scmp.ne.s32.totalorder %s195, %s196
      %p208 = scmp.eq.s32.totalorder %s39, 1
      %p209 = por %p207, %p208
      %p211 = scmp.ne.s32.totalorder %s196, %s210
      %p212 = scmp.eq.s32.totalorder %s39, 0
      %p213 = por %p211, %p212
      %s215 = sadd.s32 %s214, 1
      %p218 = scmp.eq.s32.totalorder %s33, 1
      %p219 = scmp.ne.s32.totalorder %s214, %s216
      %p220 = scmp.eq.s32.totalorder %s33, 0
      %p221 = por %p219, %p220
      %p222 = scmp.ne.s32.totalorder %s214, %s216
      %p223 = scmp.eq.s32.totalorder %s38, 1
      %p224 = por %p222, %p223
      %p225 = scmp.ne.s32.totalorder %s216, %s217
      %p226 = scmp.eq.s32.totalorder %s38, 0
      %p227 = por %p225, %p226
      %p228 = scmp.ne.s32.totalorder %s216, %s217
      %p229 = scmp.eq.s32.totalorder %s39, 1
      %p230 = por %p228, %p229
      %p232 = scmp.ne.s32.totalorder %s217, %s231
      %p233 = scmp.eq.s32.totalorder %s39, 0
      %p234 = por %p232, %p233
      %s236 = sadd.s32 %s235, 1
      %p239 = scmp.eq.s32.totalorder %s33, 1
      %p240 = scmp.ne.s32.totalorder %s235, %s237
      %p241 = scmp.eq.s32.totalorder %s33, 0
      %p242 = por %p240, %p241
      %p243 = scmp.ne.s32.totalorder %s235, %s237
      %p244 = scmp.eq.s32.totalorder %s38, 1
      %p245 = por %p243, %p244
      %p246 = scmp.ne.s32.totalorder %s237, %s238
      %p247 = scmp.eq.s32.totalorder %s38, 0
      %p248 = por %p246, %p247
      %p249 = scmp.ne.s32.totalorder %s237, %s238
      %p250 = scmp.eq.s32.totalorder %s39, 1
      %p251 = por %p249, %p250
      %p253 = scmp.ne.s32.totalorder %s238, %s252
      %p254 = scmp.eq.s32.totalorder %s39, 0
      %p255 = por %p253, %p254
      %s257 = sadd.s32 %s256, 1
      %p260 = scmp.eq.s32.totalorder %s33, 1
      %p261 = scmp.ne.s32.totalorder %s256, %s258
      %p262 = scmp.eq.s32.totalorder %s33, 0
      %p263 = por %p261, %p262
      %p264 = scmp.ne.s32.totalorder %s256, %s258
      %p265 = scmp.eq.s32.totalorder %s38, 1
      %p266 = por %p264, %p265
      %p267 = scmp.ne.s32.totalorder %s258, %s259
      %p268 = scmp.eq.s32.totalorder %s38, 0
      %p269 = por %p267, %p268
      %p270 = scmp.ne.s32.totalorder %s258, %s259
      %p271 = scmp.eq.s32.totalorder %s39, 1
      %p272 = por %p270, %p271
      %p274 = scmp.ne.s32.totalorder %s259, %s273
      %p275 = scmp.eq.s32.totalorder %s39, 0
      %p276 = por %p274, %p275
      %s278 = sadd.s32 %s277, 1
      %p281 = scmp.eq.s32.totalorder %s33, 1
      %p282 = scmp.ne.s32.totalorder %s277, %s279
      %p283 = scmp.eq.s32.totalorder %s33, 0
      %p284 = por %p282, %p283
      %p285 = scmp.ne.s32.totalorder %s277, %s279
      %p286 = scmp.eq.s32.totalorder %s38, 1
      %p287 = por %p285, %p286
      %p288 = scmp.ne.s32.totalorder %s279, %s280
      %p289 = scmp.eq.s32.totalorder %s38, 0
      %p290 = por %p288, %p289
      %p291 = scmp.ne.s32.totalorder %s279, %s280
      %p292 = scmp.eq.s32.totalorder %s39, 1
      %p293 = por %p291, %p292
      %p295 = scmp.ne.s32.totalorder %s280, %s294
      %p296 = scmp.eq.s32.totalorder %s39, 0
      %p297 = por %p295, %p296
      %s299 = sadd.s32 %s298, 1
      %p302 = scmp.eq.s32.totalorder %s33, 1
      %p303 = scmp.ne.s32.totalorder %s298, %s300
      %p304 = scmp.eq.s32.totalorder %s33, 0
      %p305 = por %p303, %p304
      %p306 = scmp.ne.s32.totalorder %s298, %s300
      %p307 = scmp.eq.s32.totalorder %s38, 1
      %p308 = por %p306, %p307
      %p309 = scmp.ne.s32.totalorder %s300, %s301
      %p310 = scmp.eq.s32.totalorder %s38, 0
      %p311 = por %p309, %p310
      %p312 = scmp.ne.s32.totalorder %s300, %s301
      %p313 = scmp.eq.s32.totalorder %s39, 1
      %p314 = por %p312, %p313
      %p316 = scmp.ne.s32.totalorder %s301, %s315
      %p317 = scmp.eq.s32.totalorder %s39, 0
      %p318 = por %p316, %p317
      %s320 = sadd.s32 %s319, 1
      %p323 = scmp.eq.s32.totalorder %s33, 1
      %p324 = scmp.ne.s32.totalorder %s319, %s321
      %p325 = scmp.eq.s32.totalorder %s33, 0
      %p326 = por %p324, %p325
      %p327 = scmp.ne.s32.totalorder %s319, %s321
      %p328 = scmp.eq.s32.totalorder %s38, 1
      %p329 = por %p327, %p328
      %p330 = scmp.ne.s32.totalorder %s321, %s322
      %p331 = scmp.eq.s32.totalorder %s38, 0
      %p332 = por %p330, %p331
      %p333 = scmp.ne.s32.totalorder %s321, %s322
      %p334 = scmp.eq.s32.totalorder %s39, 1
      %p335 = por %p333, %p334
      %p337 = scmp.ne.s32.totalorder %s322, %s336
      %p338 = scmp.eq.s32.totalorder %s39, 0
      %p339 = por %p337, %p338
      %s341 = sadd.s32 %s340, 1
      %p344 = scmp.eq.s32.totalorder %s33, 1
      %p345 = scmp.ne.s32.totalorder %s340, %s342
      %p346 = scmp.eq.s32.totalorder %s33, 0
      %p347 = por %p345, %p346
      %p348 = scmp.ne.s32.totalorder %s340, %s342
      %p349 = scmp.eq.s32.totalorder %s38, 1
      %p350 = por %p348, %p349
      %p351 = scmp.ne.s32.totalorder %s342, %s343
      %p352 = scmp.eq.s32.totalorder %s38, 0
      %p353 = por %p351, %p352
      %p354 = scmp.ne.s32.totalorder %s342, %s343
      %p355 = scmp.eq.s32.totalorder %s39, 1
      %p356 = por %p354, %p355
      %p358 = scmp.ne.s32.totalorder %s343, %s357
      %p359 = scmp.eq.s32.totalorder %s39, 0
      %p360 = por %p358, %p359
      %s362 = sadd.s32 %s361, 1
      %p365 = scmp.eq.s32.totalorder %s33, 1
      %p366 = scmp.ne.s32.totalorder %s361, %s363
      %p367 = scmp.eq.s32.totalorder %s33, 0
      %p368 = por %p366, %p367
      %p369 = scmp.ne.s32.totalorder %s361, %s363
      %p370 = scmp.eq.s32.totalorder %s38, 1
      %p371 = por %p369, %p370
      %p372 = scmp.ne.s32.totalorder %s363, %s364
      %p373 = scmp.eq.s32.totalorder %s38, 0
      %p374 = por %p372, %p373
      %p375 = scmp.ne.s32.totalorder %s363, %s364
      %p376 = scmp.eq.s32.totalorder %s39, 1
      %p377 = por %p375, %p376
      %p379 = scmp.ne.s32.totalorder %s364, %s378
      %p380 = scmp.eq.s32.totalorder %s39, 0
      %p381 = por %p379, %p380
      %s383 = sadd.s32 %s382, 1
      %p386 = scmp.eq.s32.totalorder %s33, 1
      %p387 = scmp.ne.s32.totalorder %s382, %s384
      %p388 = scmp.eq.s32.totalorder %s33, 0
      %p389 = por %p387, %p388
      %p390 = scmp.ne.s32.totalorder %s382, %s384
      %p391 = scmp.eq.s32.totalorder %s38, 1
      %p392 = por %p390, %p391
      %p393 = scmp.ne.s32.totalorder %s384, %s385
      %p394 = scmp.eq.s32.totalorder %s38, 0
      %p395 = por %p393, %p394
      %p396 = scmp.ne.s32.totalorder %s384, %s385
      %p397 = scmp.eq.s32.totalorder %s39, 1
      %p398 = por %p396, %p397
      %p400 = scmp.ne.s32.totalorder %s385, %s399
      %p401 = scmp.eq.s32.totalorder %s39, 0
      %p402 = por %p400, %p401
      %s404 = sadd.s32 %s403, 1
      %p407 = scmp.eq.s32.totalorder %s33, 1
      %p408 = scmp.ne.s32.totalorder %s403, %s405
      %p409 = scmp.eq.s32.totalorder %s33, 0
      %p410 = por %p408, %p409
      %p411 = scmp.ne.s32.totalorder %s403, %s405
      %p412 = scmp.eq.s32.totalorder %s38, 1
      %p413 = por %p411, %p412
      %p414 = scmp.ne.s32.totalorder %s405, %s406
      %p415 = scmp.eq.s32.totalorder %s38, 0
      %p416 = por %p414, %p415
      %p417 = scmp.ne.s32.totalorder %s405, %s406
      %p418 = scmp.eq.s32.totalorder %s39, 1
      %p419 = por %p417, %p418
      %p421 = scmp.ne.s32.totalorder %s406, %s420
      %p422 = scmp.eq.s32.totalorder %s39, 0
      %p423 = por %p421, %p422
      %s425 = sadd.s32 %s424, 1
      %p428 = scmp.eq.s32.totalorder %s33, 1
      %p429 = scmp.ne.s32.totalorder %s424, %s426
      %p430 = scmp.eq.s32.totalorder %s33, 0
      %p431 = por %p429, %p430
      %p432 = scmp.ne.s32.totalorder %s424, %s426
      %p433 = scmp.eq.s32.totalorder %s38, 1
      %p434 = por %p432, %p433
      %p435 = scmp.ne.s32.totalorder %s426, %s427
      %p436 = scmp.eq.s32.totalorder %s38, 0
      %p437 = por %p435, %p436
      %p438 = scmp.ne.s32.totalorder %s426, %s427
      %p439 = scmp.eq.s32.totalorder %s39, 1
      %p440 = por %p438, %p439
      %p442 = scmp.ne.s32.totalorder %s427, %s441
      %p443 = scmp.eq.s32.totalorder %s39, 0
      %p444 = por %p442, %p443
      %s445 = ssub.s32 %s33, %s40
      %p446 = scmp.eq.s32.totalorder %s445, 0
      %s448 = sadd.s32 %s447, 1
      %s449 = scalar_select %p446, %s447, %s448
      %p452 = pneg %p446
      %p453 = scmp.eq.s32.totalorder %s33, 1
      %p454 = por %p452, %p453
      %p455 = scmp.ne.s32.totalorder %s447, %s450
      %p456 = scmp.eq.s32.totalorder %s33, 0
      %p457 = por %p455, %p456
      %p458 = scmp.ne.s32.totalorder %s447, %s450
      %p459 = scmp.eq.s32.totalorder %s38, 1
      %p460 = por %p458, %p459
      %p461 = scmp.ne.s32.totalorder %s450, %s451
      %p462 = scmp.eq.s32.totalorder %s38, 0
      %p463 = por %p461, %p462
      %p464 = scmp.ne.s32.totalorder %s450, %s451
      %p465 = scmp.eq.s32.totalorder %s39, 1
      %p466 = por %p464, %p465
      %p468 = scmp.ne.s32.totalorder %s451, %s467
      %p469 = scmp.eq.s32.totalorder %s39, 0
      %p470 = por %p468, %p469
      %p471 = scmp.le.s32.totalorder 1, %s33
      %p472 = scmp.lt.s32.totalorder %s33, 3
      %p473 = pnand %p471, %p472
      %p474 = pneg %p473
      // Predicated region
      $region9: #{tpu_custom_call.1} parent=5 // pred_check
        _
      $region10: #{tpu_custom_call.1} parent=5 // pred_check_branch
        %476 = sbr.rel (%p473) target = $region12
      $region11: #{tpu_custom_call.1} parent=5 // pred_region
        %s477 = ssub.s32 %s33, 1
        // Predicated region
        $region13: #{tpu_custom_call.1} parent=11 // pred_check
          %p478 = pneg %p80
        $region14: #{tpu_custom_call.1} parent=11 // pred_check_branch
          %480 = sbr.rel (%p478) target = $region16
        $region15: #{tpu_custom_call.1} parent=11 // pred_region
          _
        $region16: #{tpu_custom_call.1} parent=11 // pred_fallthru
          _
        // Predicated region
        $region17: #{tpu_custom_call.1} parent=11 // pred_check
          %p481 = pneg %p101
        $region18: #{tpu_custom_call.1} parent=11 // pred_check_branch
          %483 = sbr.rel (%p481) target = $region20
        $region19: #{tpu_custom_call.1} parent=11 // pred_region
          _
        $region20: #{tpu_custom_call.1} parent=11 // pred_fallthru
          _
        // Predicated region
        $region21: #{tpu_custom_call.1} parent=11 // pred_check
          %p484 = pneg %p122
        $region22: #{tpu_custom_call.1} parent=11 // pred_check_branch
          %486 = sbr.rel (%p484) target = $region24
        $region23: #{tpu_custom_call.1} parent=11 // pred_region
          %488 = vsyncadd [#allocation5], 0
          %s489 = sshll.u32 %s3, 4
          %s490 = int_to_ptr.hbm [resolvable:$true] %s489
          %s491 = sshll.u32 [#allocation4], 4
          %s492 = int_to_ptr.vmem [resolvable:$true] %s491
          %497 = dma.hbm_to_vmem [thread:$0]  %s490, 1024, %s492, [#allocation5], 256, 256, 16
        $region24: #{tpu_custom_call.1} parent=11 // pred_fallthru
          _
        // Predicated region
        $region25: #{tpu_custom_call.1} parent=11 // pred_check
          %p498 = pneg %p143
        $region26: #{tpu_custom_call.1} parent=11 // pred_check_branch
          %500 = sbr.rel (%p498) target = $region28
        $region27: #{tpu_custom_call.1} parent=11 // pred_region
          _
        $region28: #{tpu_custom_call.1} parent=11 // pred_fallthru
          _
        // Predicated region
        $region29: #{tpu_custom_call.1} parent=11 // pred_check
          %p501 = pneg %p164
        $region30: #{tpu_custom_call.1} parent=11 // pred_check_branch
          %503 = sbr.rel (%p501) target = $region32
        $region31: #{tpu_custom_call.1} parent=11 // pred_region
          %505 = vsyncadd [#allocation8], 0
          %s506 = sshll.u32 %s5, 4
          %s507 = int_to_ptr.hbm [resolvable:$true] %s506
          %s508 = sshll.u32 [#allocation7], 4
          %s509 = int_to_ptr.vmem [resolvable:$true] %s508
          %514 = dma.hbm_to_vmem [thread:$0]  %s507, 2048, %s509, [#allocation8], 256, 256, 16
        $region32: #{tpu_custom_call.1} parent=11 // pred_fallthru
          _
        // Predicated region
        $region33: #{tpu_custom_call.1} parent=11 // pred_check
          %p515 = pneg %p185
        $region34: #{tpu_custom_call.1} parent=11 // pred_check_branch
          %517 = sbr.rel (%p515) target = $region36
        $region35: #{tpu_custom_call.1} parent=11 // pred_region
          _
        $region36: #{tpu_custom_call.1} parent=11 // pred_fallthru
          _
        // Predicated region
        $region37: #{tpu_custom_call.1} parent=11 // pred_check
          %p518 = pneg %p206
        $region38: #{tpu_custom_call.1} parent=11 // pred_check_branch
          %520 = sbr.rel (%p518) target = $region40
        $region39: #{tpu_custom_call.1} parent=11 // pred_region
          %522 = vsyncadd [#allocation8], 0
          %s523 = sshll.u32 %s7, 4
          %s524 = int_to_ptr.hbm [resolvable:$true] %s523
          %s525 = sshll.u32 [#allocation9], 4
          %s526 = int_to_ptr.vmem [resolvable:$true] %s525
          %531 = dma.hbm_to_vmem [thread:$0]  %s524, 2048, %s526, [#allocation8], 256, 256, 16
        $region40: #{tpu_custom_call.1} parent=11 // pred_fallthru
          _
        // Predicated region
        $region41: #{tpu_custom_call.1} parent=11 // pred_check
          %p532 = pneg %p227
        $region42: #{tpu_custom_call.1} parent=11 // pred_check_branch
          %534 = sbr.rel (%p532) target = $region44
        $region43: #{tpu_custom_call.1} parent=11 // pred_region
          _
        $region44: #{tpu_custom_call.1} parent=11 // pred_fallthru
          _
        // Predicated region
        $region45: #{tpu_custom_call.1} parent=11 // pred_check
          %p535 = pneg %p248
        $region46: #{tpu_custom_call.1} parent=11 // pred_check_branch
          %537 = sbr.rel (%p535) target = $region48
        $region47: #{tpu_custom_call.1} parent=11 // pred_region
          %539 = vsyncadd [#allocation11], 0
          %s540 = sshll.u32 %s9, 4
          %s541 = int_to_ptr.hbm [resolvable:$true] %s540
          %s542 = sshll.u32 [#allocation10], 4
          %s543 = int_to_ptr.vmem [resolvable:$true] %s542
          %548 = dma.hbm_to_vmem [thread:$0]  %s541, 2048, %s543, [#allocation11], 256, 256, 16
        $region48: #{tpu_custom_call.1} parent=11 // pred_fallthru
          _
        // Predicated region
        $region49: #{tpu_custom_call.1} parent=11 // pred_check
          %p549 = pneg %p269
        $region50: #{tpu_custom_call.1} parent=11 // pred_check_branch
          %551 = sbr.rel (%p549) target = $region52
        $region51: #{tpu_custom_call.1} parent=11 // pred_region
          _
        $region52: #{tpu_custom_call.1} parent=11 // pred_fallthru
          _
        // Predicated region
        $region53: #{tpu_custom_call.1} parent=11 // pred_check
          %p552 = pneg %p290
        $region54: #{tpu_custom_call.1} parent=11 // pred_check_branch
          %554 = sbr.rel (%p552) target = $region56
        $region55: #{tpu_custom_call.1} parent=11 // pred_region
          %556 = vsyncadd [#allocation11], 0
          %s557 = sshll.u32 %s11, 4
          %s558 = int_to_ptr.hbm [resolvable:$true] %s557
          %s559 = sshll.u32 [#allocation12], 4
          %s560 = int_to_ptr.vmem [resolvable:$true] %s559
          %565 = dma.hbm_to_vmem [thread:$0]  %s558, 2048, %s560, [#allocation11], 256, 256, 16
        $region56: #{tpu_custom_call.1} parent=11 // pred_fallthru
          _
        // Predicated region
        $region57: #{tpu_custom_call.1} parent=11 // pred_check
          %p566 = pneg %p311
        $region58: #{tpu_custom_call.1} parent=11 // pred_check_branch
          %568 = sbr.rel (%p566) target = $region60
        $region59: #{tpu_custom_call.1} parent=11 // pred_region
          _
        $region60: #{tpu_custom_call.1} parent=11 // pred_fallthru
          _
        // Predicated region
        $region61: #{tpu_custom_call.1} parent=11 // pred_check
          %p569 = pneg %p332
        $region62: #{tpu_custom_call.1} parent=11 // pred_check_branch
          %571 = sbr.rel (%p569) target = $region64
        $region63: #{tpu_custom_call.1} parent=11 // pred_region
          %573 = vsyncadd [#allocation14], 0
          %s574 = sshll.u32 %s13, 4
          %s575 = int_to_ptr.hbm [resolvable:$true] %s574
          %s576 = sshll.u32 [#allocation13], 4
          %s577 = int_to_ptr.vmem [resolvable:$true] %s576
          %582 = dma.hbm_to_vmem [thread:$0]  %s575, 3072, %s577, [#allocation14], 384, 384, 24
        $region64: #{tpu_custom_call.1} parent=11 // pred_fallthru
          _
        // Predicated region
        $region65: #{tpu_custom_call.1} parent=11 // pred_check
          %p583 = pneg %p353
        $region66: #{tpu_custom_call.1} parent=11 // pred_check_branch
          %585 = sbr.rel (%p583) target = $region68
        $region67: #{tpu_custom_call.1} parent=11 // pred_region
          _
        $region68: #{tpu_custom_call.1} parent=11 // pred_fallthru
          _
        // Predicated region
        $region69: #{tpu_custom_call.1} parent=11 // pred_check
          %p586 = pneg %p374
        $region70: #{tpu_custom_call.1} parent=11 // pred_check_branch
          %588 = sbr.rel (%p586) target = $region72
        $region71: #{tpu_custom_call.1} parent=11 // pred_region
          %590 = vsyncadd [#allocation14], 0
          %s591 = sshll.u32 %s15, 4
          %s592 = int_to_ptr.hbm [resolvable:$true] %s591
          %s593 = sshll.u32 [#allocation15], 4
          %s594 = int_to_ptr.vmem [resolvable:$true] %s593
          %599 = dma.hbm_to_vmem [thread:$0]  %s592, 6144, %s594, [#allocation14], 384, 384, 24
        $region72: #{tpu_custom_call.1} parent=11 // pred_fallthru
          _
        // Predicated region
        $region73: #{tpu_custom_call.1} parent=11 // pred_check
          %p600 = pneg %p395
        $region74: #{tpu_custom_call.1} parent=11 // pred_check_branch
          %602 = sbr.rel (%p600) target = $region76
        $region75: #{tpu_custom_call.1} parent=11 // pred_region
          _
        $region76: #{tpu_custom_call.1} parent=11 // pred_fallthru
          _
        // Predicated region
        $region77: #{tpu_custom_call.1} parent=11 // pred_check
          %p603 = pneg %p416
        $region78: #{tpu_custom_call.1} parent=11 // pred_check_branch
          %605 = sbr.rel (%p603) target = $region80
        $region79: #{tpu_custom_call.1} parent=11 // pred_region
          %607 = vsyncadd [#allocation17], 0
          %s608 = sshll.u32 %s17, 4
          %s609 = int_to_ptr.hbm [resolvable:$true] %s608
          %s610 = sshll.u32 [#allocation16], 4
          %s611 = int_to_ptr.vmem [resolvable:$true] %s610
          %616 = dma.hbm_to_vmem [thread:$0]  %s609, 6144, %s611, [#allocation17], 384, 384, 24
        $region80: #{tpu_custom_call.1} parent=11 // pred_fallthru
          _
        // Predicated region
        $region81: #{tpu_custom_call.1} parent=11 // pred_check
          %p617 = pneg %p437
        $region82: #{tpu_custom_call.1} parent=11 // pred_check_branch
          %619 = sbr.rel (%p617) target = $region84
        $region83: #{tpu_custom_call.1} parent=11 // pred_region
          _
        $region84: #{tpu_custom_call.1} parent=11 // pred_fallthru
          _
      $region12: #{tpu_custom_call.1} parent=5 // pred_fallthru
        _
      %p620 = scmp.lt.s32.totalorder %s33, 2
      // Predicated region
      $region85: #{tpu_custom_call.1} parent=5 // pred_check
        %p621 = pneg %p620
      $region86: #{tpu_custom_call.1} parent=5 // pred_check_branch
        %623 = sbr.rel (%p621) target = $region88
      $region87: #{tpu_custom_call.1} parent=5 // pred_region
        // Predicated region
        $region89: #{tpu_custom_call.1} parent=87 // pred_check
          %p624 = pneg %p53
        $region90: #{tpu_custom_call.1} parent=87 // pred_check_branch
          %626 = sbr.rel (%p624) target = $region92
        $region91: #{tpu_custom_call.1} parent=87 // pred_region
          %p627 = scmp.lt.s32.totalorder %s33, 1
          %s628 = scalar_select %p627, %s33, 1
          %s629 = smul.addr %s628, 2
          %s630 = smul.addr %s629, 8
          %s631 = scalar_lea.vmem %s0, %s630
        $region92: #{tpu_custom_call.1} parent=87 // pred_fallthru
          _
      $region88: #{tpu_custom_call.1} parent=5 // pred_fallthru
        _
      %p632 = scmp.le.s32.totalorder 1, %s33
      %p633 = scmp.lt.s32.totalorder %s33, 3
      %p634 = pnand %p632, %p633
      %p635 = pneg %p634
      // Predicated region
      $region93: #{tpu_custom_call.1} parent=5 // pred_check
        _
      $region94: #{tpu_custom_call.1} parent=5 // pred_check_branch
        %637 = sbr.rel (%p634) target = $region96
      $region95: #{tpu_custom_call.1} parent=5 // pred_region
        %s638 = ssub.s32 %s33, 1
        // Predicated region
        $region97: #{tpu_custom_call.1} parent=95 // pred_check
          %p639 = pneg %p122
        $region98: #{tpu_custom_call.1} parent=95 // pred_check_branch
          %641 = sbr.rel (%p639) target = $region100
        $region99: #{tpu_custom_call.1} parent=95 // pred_region
          %643 = dma.done [#allocation5], 1024
        $region100: #{tpu_custom_call.1} parent=95 // pred_fallthru
          _
        // Predicated region
        $region101: #{tpu_custom_call.1} parent=95 // pred_check
          %p644 = pneg %p164
        $region102: #{tpu_custom_call.1} parent=95 // pred_check_branch
          %646 = sbr.rel (%p644) target = $region104
        $region103: #{tpu_custom_call.1} parent=95 // pred_region
          %648 = dma.done [#allocation8], 2048
        $region104: #{tpu_custom_call.1} parent=95 // pred_fallthru
          _
        // Predicated region
        $region105: #{tpu_custom_call.1} parent=95 // pred_check
          %p649 = pneg %p206
        $region106: #{tpu_custom_call.1} parent=95 // pred_check_branch
          %651 = sbr.rel (%p649) target = $region108
        $region107: #{tpu_custom_call.1} parent=95 // pred_region
          %653 = dma.done [#allocation8], 2048
        $region108: #{tpu_custom_call.1} parent=95 // pred_fallthru
          _
        // Predicated region
        $region109: #{tpu_custom_call.1} parent=95 // pred_check
          %p654 = pneg %p248
        $region110: #{tpu_custom_call.1} parent=95 // pred_check_branch
          %656 = sbr.rel (%p654) target = $region112
        $region111: #{tpu_custom_call.1} parent=95 // pred_region
          %658 = dma.done [#allocation11], 2048
        $region112: #{tpu_custom_call.1} parent=95 // pred_fallthru
          _
        // Predicated region
        $region113: #{tpu_custom_call.1} parent=95 // pred_check
          %p659 = pneg %p290
        $region114: #{tpu_custom_call.1} parent=95 // pred_check_branch
          %661 = sbr.rel (%p659) target = $region116
        $region115: #{tpu_custom_call.1} parent=95 // pred_region
          %663 = dma.done [#allocation11], 2048
        $region116: #{tpu_custom_call.1} parent=95 // pred_fallthru
          _
        // Predicated region
        $region117: #{tpu_custom_call.1} parent=95 // pred_check
          %p664 = pneg %p332
        $region118: #{tpu_custom_call.1} parent=95 // pred_check_branch
          %666 = sbr.rel (%p664) target = $region120
        $region119: #{tpu_custom_call.1} parent=95 // pred_region
          %668 = dma.done [#allocation14], 3072
        $region120: #{tpu_custom_call.1} parent=95 // pred_fallthru
          _
        // Predicated region
        $region121: #{tpu_custom_call.1} parent=95 // pred_check
          %p669 = pneg %p374
        $region122: #{tpu_custom_call.1} parent=95 // pred_check_branch
          %671 = sbr.rel (%p669) target = $region124
        $region123: #{tpu_custom_call.1} parent=95 // pred_region
          %673 = dma.done [#allocation14], 6144
        $region124: #{tpu_custom_call.1} parent=95 // pred_fallthru
          _
        // Predicated region
        $region125: #{tpu_custom_call.1} parent=95 // pred_check
          %p674 = pneg %p416
        $region126: #{tpu_custom_call.1} parent=95 // pred_check_branch
          %676 = sbr.rel (%p674) target = $region128
        $region127: #{tpu_custom_call.1} parent=95 // pred_region
          %678 = dma.done [#allocation17], 6144
        $region128: #{tpu_custom_call.1} parent=95 // pred_fallthru
          _
        %p679 = scmp.lt.s32.totalorder %s38, 1
        %s680 = scalar_select %p679, %s38, 1
        %s681 = smul.addr %s680, 2
        %s682 = smul.addr %s681, 8
        %s683 = scalar_lea.vmem %s0, %s682
        %p684 = pneg %p59
        %p685 = pneg %p56
        %p686 = pneg %p80
        %p687 = pneg %p77
        %p688 = pneg %p101
        %p689 = pneg %p98
        %p690 = pneg %p122
        %p691 = pneg %p119
        %p692 = pneg %p143
        %p693 = pneg %p140
        %p694 = pneg %p164
        %p695 = pneg %p161
        %p696 = pneg %p185
        %p697 = pneg %p182
        %p698 = pneg %p206
        %p699 = pneg %p203
        %p700 = pneg %p227
        %p701 = pneg %p224
        %p702 = pneg %p248
        %p703 = pneg %p245
        %p704 = pneg %p269
        %p705 = pneg %p266
        %p706 = pneg %p290
        %p707 = pneg %p287
        %p708 = pneg %p311
        %p709 = pneg %p308
        %p710 = pneg %p332
        %p711 = pneg %p329
        %p712 = pneg %p353
        %p713 = pneg %p350
        %p714 = pneg %p374
        %p715 = pneg %p371
        %p716 = pneg %p395
        %p717 = pneg %p392
        %p718 = pneg %p416
        %p719 = pneg %p413
        %p720 = pneg %p437
        %p721 = pneg %p434
        %p722 = pneg %p463
        %p723 = pneg %p460
        %s724 = sand.u32 %s450, 1
        %s725 = scalar_lea.sflag [#allocation6], %s724
        %s726 = sand.u32 %s450, 1
        %s727 = smul.addr %s726, 4
        %s728 = scalar_lea.vmem [#allocation18], %s727
        %p729 = scmp.lt.s32.totalorder %s38, 1
        %s730 = scalar_select %p729, %s38, 1
        %s731 = smul.addr %s730, 2
        %s732 = smul.addr %s731, 8
        %s733 = scalar_lea.vmem %s0, %s732
        %v734 = vld [vmem:[%s733] sm:$0xff]
        %v735 = vld [vmem:[%s733 + $0x8] sm:$0xff]
        %v736 = vld [vmem:[%s1] sm:$0xff]
        %738 = vst [vmem:[#allocation1] ss:$2 sm:$0xff] %v736
        %v739 = vld.sshfl [vmem:[#allocation1] sm:$0xff pattern:$0x75316420]
        %v740 = vld.sshfl [vmem:[#allocation1 + $0x8] sm:$0xff pattern:$0x75316420]
        %vm741 = vcmask 31744
        %v743 = vsel %vm741, %v734, 0
        %v746 = vsel %vm741, %v735, 0
        %vm748 = vcmask 1043456
        %v749 = vsel %vm748, %v739, 0
        %v751 = vsel %vm748, %v740, 0
        %753 = vmatpush.msra.mxu0 0.0
        %754 = vmatpush.msra.mxu0 0.0
        %755 = vmatpush.msra.mxu0 0.0
        %756 = vmatpush.msra.mxu0 0.0
        %757 = vmatpush.msra.mxu0 0.0
        %758 = vmatpush.msra.mxu0 0.0
        %759 = vmatpush.msra.mxu0 0.0
        %760 = vmatpush.msra.mxu0 0.0
        %761 = vmatpush.msra.mxu0 0.0
        %762 = vmatpush.msra.mxu0 0.0
        %763 = vmatpush.msra.mxu0 0.0
        %764 = vmatpush.msra.mxu0 0.0
        %765 = vmatpush.msra.mxu0 0.0
        %766 = vmatpush.msra.mxu0 0.0
        %767 = vmatpush.msra.mxu0 0.0
        %768 = vmatpush.msra.mxu0 %v749
        %769 = vmatmul.f32.gmra.mxu0 %v743
        %v770 = vpop.f32.mrf.mxu0
        %v771 = vadd.f32 0.0, %v770
        %772 = vmatmul.f32.gmra.mxu0 %v746
        %v773 = vpop.f32.mrf.mxu0
        %v774 = vadd.f32 0.0, %v773
        %775 = vdwg.mxu0
        %776 = vmatpush.msra.mxu0 0.0
        %777 = vmatpush.msra.mxu0 0.0
        %778 = vmatpush.msra.mxu0 0.0
        %779 = vmatpush.msra.mxu0 0.0
        %780 = vmatpush.msra.mxu0 0.0
        %781 = vmatpush.msra.mxu0 0.0
        %782 = vmatpush.msra.mxu0 0.0
        %783 = vmatpush.msra.mxu0 0.0
        %784 = vmatpush.msra.mxu0 0.0
        %785 = vmatpush.msra.mxu0 0.0
        %786 = vmatpush.msra.mxu0 0.0
        %787 = vmatpush.msra.mxu0 0.0
        %788 = vmatpush.msra.mxu0 0.0
        %789 = vmatpush.msra.mxu0 0.0
        %790 = vmatpush.msra.mxu0 0.0
        %791 = vmatpush.msra.mxu0 %v751
        %792 = vmatmul.f32.gmra.mxu0 %v743
        %v793 = vpop.f32.mrf.mxu0
        %v794 = vadd.f32 0.0, %v793
        %795 = vmatmul.f32.gmra.mxu0 %v746
        %v796 = vpop.f32.mrf.mxu0
        %v797 = vadd.f32 0.0, %v796
        %798 = vdwg.mxu0
        %vm803 = vcmask 1041408
        %v804 = vrot.slane %v771, 6
        %v805 = vrot.slane %v794, 6
        %v806 = vrot.slane %v774, 6
        %v807 = vsel %vm803, %v804, %v806
        %v808 = vrot.slane %v797, 6
        %v809 = vsel %vm803, %v805, %v808
        %v815 = vsel %vm803, 0.0, %v804
        %v816 = vsel %vm803, 0.0, %v805
        %v817 = vsel %vm803, %v806, 0.0
        %v818 = vsel %vm803, %v808, 0.0
        %vm821 = vcmask 1046528
        %v822 = vrot.slane %v815, 1
        %v823 = vrot.slane %v807, 1
        %v824 = vsel %vm821, %v822, %v823
        %v825 = vrot.slane %v817, 1
        %v826 = vsel %vm821, %v823, %v825
        %827 = vrot.lane.b32.xlu0 %v824, 96
        %v828 = vpop.permute.xlu0 %827
        %829 = vrot.lane.b32.xlu0 %v826, 96
        %v830 = vpop.permute.xlu0 %829
        %v833 = vadd.f32 %v815, %v828
        %v834 = vadd.f32 %v807, %v830
        %vm835 = vcmask 1045504
        %v836 = vrot.slane %v815, 2
        %v837 = vrot.slane %v807, 2
        %v838 = vsel %vm835, %v836, %v837
        %v839 = vrot.slane %v817, 2
        %v840 = vsel %vm835, %v837, %v839
        %841 = vrot.lane.b32.xlu0 %v838, 64
        %v842 = vpop.permute.xlu0 %841
        %843 = vrot.lane.b32.xlu0 %v840, 64
        %v844 = vpop.permute.xlu0 %843
        %v847 = vadd.f32 %v833, %v842
        %v848 = vadd.f32 %v834, %v844
        %vm849 = vcmask 1044480
        %v850 = vrot.slane %v815, 3
        %v851 = vrot.slane %v807, 3
        %v852 = vsel %vm849, %v850, %v851
        %v853 = vrot.slane %v817, 3
        %v854 = vsel %vm849, %v851, %v853
        %855 = vrot.lane.b32.xlu0 %v852, 32
        %v856 = vpop.permute.xlu0 %855
        %857 = vrot.lane.b32.xlu0 %v854, 32
        %v858 = vpop.permute.xlu0 %857
        %v861 = vadd.f32 %v847, %v856
        %v862 = vadd.f32 %v848, %v858
        %v865 = vrot.slane %v816, 4
        %v866 = vrot.slane %v809, 4
        %v867 = vsel %vm748, %v865, %v866
        %v868 = vrot.slane %v818, 4
        %v869 = vsel %vm748, %v866, %v868
        %v872 = vadd.f32 %v861, %v867
        %v873 = vadd.f32 %v862, %v869
        %vm874 = vcmask 1042432
        %v875 = vrot.slane %v816, 5
        %v876 = vrot.slane %v809, 5
        %v877 = vsel %vm874, %v875, %v876
        %v878 = vrot.slane %v818, 5
        %v879 = vsel %vm874, %v876, %v878
        %880 = vrot.lane.b32.xlu0 %v877, 96
        %v881 = vpop.permute.xlu0 %880
        %882 = vrot.lane.b32.xlu0 %v879, 96
        %v883 = vpop.permute.xlu0 %882
        %v886 = vadd.f32 %v872, %v881
        %v887 = vadd.f32 %v873, %v883
        %v888 = vld [vmem:[%s2] sm:$0x1]
        %v890 = vperm.slane %v888, 0
        %v892 = vadd.f32 %v886, %v890
        %v893 = vadd.f32 %v887, %v890
        %v894 = vmax.f32 %v892, 0.0
        %v895 = vmax.f32 %v893, 0.0
        %vm896 = vcmask 261120
        %897 = vst.msk [vmem:[#allocation2] sm:$0xff] %vm896, %v894
        %898 = vst.msk [vmem:[#allocation2 + $0x8] sm:$0xff] %vm896, %v895
        %v899 = vld [vmem:[#allocation2] ss:$2 sm:$0xff]
        %s900 = scalar_lea.vmem [#allocation2], 1
        %v901 = vld [vmem:[%s900] ss:$2 sm:$0xff]
        %v902 = vmax.f32 %v899, %v901
        %v903 = vld [vmem:[#allocation4] sm:$0xff]
        %v904 = vld [vmem:[#allocation4 + $0x8] sm:$0xff]
        %v905 = vld [vmem:[#allocation4 + $0x10] sm:$0xff]
        %v906 = vld [vmem:[#allocation4 + $0x18] sm:$0xff]
        %v907 = vld [vmem:[#allocation4 + $0x20] sm:$0xff]
        %v908 = vld [vmem:[#allocation4 + $0x28] sm:$0xff]
        %v909 = vld [vmem:[#allocation4 + $0x30] sm:$0xff]
        %v910 = vld [vmem:[#allocation4 + $0x38] sm:$0xff]
        %v912 = vsel %vm896, %v902, 0
        %914 = vmatpush.msra.mxu0 0.0
        %915 = vmatpush.msra.mxu0 0.0
        %916 = vmatpush.msra.mxu0 0.0
        %917 = vmatpush.msra.mxu0 0.0
        %918 = vmatpush.msra.mxu0 0.0
        %919 = vmatpush.msra.mxu0 0.0
        %920 = vmatpush.msra.mxu0 0.0
        %921 = vmatpush.msra.mxu0 0.0
        %922 = vmatpush.msra.mxu0 0.0
        %923 = vmatpush.msra.mxu0 0.0
        %924 = vmatpush.msra.mxu0 0.0
        %925 = vmatpush.msra.mxu0 0.0
        %926 = vmatpush.msra.mxu0 %v909
        %927 = vmatpush.msra.mxu0 %v907
        %928 = vmatpush.msra.mxu0 %v905
        %929 = vmatpush.msra.mxu0 %v903
        %930 = vmatmul.f32.gmra.mxu0 %v912
        %v931 = vpop.f32.mrf.mxu0
        %v932 = vadd.f32 0.0, %v931
        %933 = vdwg.mxu0
        %934 = vmatpush.msra.mxu0 0.0
        %935 = vmatpush.msra.mxu0 0.0
        %936 = vmatpush.msra.mxu0 0.0
        %937 = vmatpush.msra.mxu0 0.0
        %938 = vmatpush.msra.mxu0 0.0
        %939 = vmatpush.msra.mxu0 0.0
        %940 = vmatpush.msra.mxu0 0.0
        %941 = vmatpush.msra.mxu0 0.0
        %942 = vmatpush.msra.mxu0 0.0
        %943 = vmatpush.msra.mxu0 0.0
        %944 = vmatpush.msra.mxu0 0.0
        %945 = vmatpush.msra.mxu0 0.0
        %946 = vmatpush.msra.mxu0 %v910
        %947 = vmatpush.msra.mxu0 %v908
        %948 = vmatpush.msra.mxu0 %v906
        %949 = vmatpush.msra.mxu0 %v904
        %950 = vmatmul.f32.gmra.mxu0 %v912
        %v951 = vpop.f32.mrf.mxu0
        %v952 = vadd.f32 0.0, %v951
        %953 = vdwg.mxu0
        %v956 = vrot.slane %v932, 7
        %v957 = vrot.slane %v952, 7
        %vm960 = vcmask 1040384
        %v961 = vsel %vm960, 0.0, %v956
        %v962 = vsel %vm960, 0.0, %v957
        %v963 = vsel %vm960, %v956, 0.0
        %v964 = vsel %vm960, %v957, 0.0
        %v967 = vrot.slane %v961, 1
        %v968 = vrot.slane %v963, 1
        %v969 = vsel %vm821, %v967, %v968
        %970 = vrot.lane.b32.xlu0 %v969, 64
        %v971 = vpop.permute.xlu0 %970
        %v973 = vadd.f32 %v961, %v971
        %v976 = vrot.slane %v962, 2
        %v977 = vrot.slane %v964, 2
        %v978 = vsel %vm835, %v976, %v977
        %v980 = vadd.f32 %v973, %v978
        %v981 = vld [vmem:[%s4] sm:$0x1]
        %v983 = vperm.slane %v981, 0
        %v985 = vadd.f32 %v980, %v983
        %v986 = vmax.f32 %v985, 0.0
        %vm987 = vcmask 523264
        %988 = vst.msk [vmem:[#allocation3] sm:$0xff] %vm987, %v986
        %v989 = vld [vmem:[#allocation3] ss:$2 sm:$0xf]
        %s990 = scalar_lea.vmem [#allocation3], 1
        %v991 = vld [vmem:[%s990] ss:$2 sm:$0xf]
        %v992 = vmax.f32 %v989, %v991
        %v993 = vmul.f32 %v992, 0.01
        %v994 = vmax.f32 %v992, %v993
        %v995 = vld [vmem:[#allocation7] sm:$0xff]
        %v996 = vld [vmem:[#allocation7 + $0x8] sm:$0xff]
        %v997 = vld [vmem:[#allocation7 + $0x10] sm:$0xff]
        %v998 = vld [vmem:[#allocation7 + $0x18] sm:$0xff]
        %v999 = vld [vmem:[#allocation7 + $0x20] sm:$0xff]
        %v1000 = vld [vmem:[#allocation7 + $0x28] sm:$0xff]
        %v1001 = vld [vmem:[#allocation7 + $0x30] sm:$0xff]
        %v1002 = vld [vmem:[#allocation7 + $0x38] sm:$0xff]
        %v1003 = vld [vmem:[#allocation7 + $0x40] sm:$0xff]
        %v1004 = vld [vmem:[#allocation7 + $0x48] sm:$0xff]
        %v1005 = vld [vmem:[#allocation7 + $0x50] sm:$0xff]
        %v1006 = vld [vmem:[#allocation7 + $0x58] sm:$0xff]
        %v1007 = vld [vmem:[#allocation7 + $0x60] sm:$0xff]
        %v1008 = vld [vmem:[#allocation7 + $0x68] sm:$0xff]
        %v1009 = vld [vmem:[#allocation7 + $0x70] sm:$0xff]
        %v1010 = vld [vmem:[#allocation7 + $0x78] sm:$0xff]
        %v1012 = vsel %vm987, %v994, 0
        %1014 = vmatpush.msra.mxu0 0.0
        %1015 = vmatpush.msra.mxu0 0.0
        %1016 = vmatpush.msra.mxu0 0.0
        %1017 = vmatpush.msra.mxu0 0.0
        %1018 = vmatpush.msra.mxu0 0.0
        %1019 = vmatpush.msra.mxu0 0.0
        %1020 = vmatpush.msra.mxu0 0.0
        %1021 = vmatpush.msra.mxu0 0.0
        %1022 = vmatpush.msra.mxu0 %v1009
        %1023 = vmatpush.msra.mxu0 %v1007
        %1024 = vmatpush.msra.mxu0 %v1005
        %1025 = vmatpush.msra.mxu0 %v1003
        %1026 = vmatpush.msra.mxu0 %v1001
        %1027 = vmatpush.msra.mxu0 %v999
        %1028 = vmatpush.msra.mxu0 %v997
        %1029 = vmatpush.msra.mxu0 %v995
        %1030 = vmatmul.f32.gmra.mxu0 %v1012
        %v1031 = vpop.f32.mrf.mxu0
        %v1032 = vadd.f32 0.0, %v1031
        %1033 = vdwg.mxu0
        %1034 = vmatpush.msra.mxu0 0.0
        %1035 = vmatpush.msra.mxu0 0.0
        %1036 = vmatpush.msra.mxu0 0.0
        %1037 = vmatpush.msra.mxu0 0.0
        %1038 = vmatpush.msra.mxu0 0.0
        %1039 = vmatpush.msra.mxu0 0.0
        %1040 = vmatpush.msra.mxu0 0.0
        %1041 = vmatpush.msra.mxu0 0.0
        %1042 = vmatpush.msra.mxu0 %v1010
        %1043 = vmatpush.msra.mxu0 %v1008
        %1044 = vmatpush.msra.mxu0 %v1006
        %1045 = vmatpush.msra.mxu0 %v1004
        %1046 = vmatpush.msra.mxu0 %v1002
        %1047 = vmatpush.msra.mxu0 %v1000
        %1048 = vmatpush.msra.mxu0 %v998
        %1049 = vmatpush.msra.mxu0 %v996
        %1050 = vmatmul.f32.gmra.mxu0 %v1012
        %v1051 = vpop.f32.mrf.mxu0
        %v1052 = vadd.f32 0.0, %v1051
        %1053 = vdwg.mxu0
        %v1056 = vrot.slane %v1032, 7
        %v1057 = vrot.slane %v1052, 7
        %v1060 = vsel %vm960, 0.0, %v1056
        %v1061 = vsel %vm960, 0.0, %v1057
        %v1062 = vsel %vm849, %v1060, 0.0
        %v1063 = vsel %vm849, %v1061, 0.0
        %v1065 = vrot.slane %v1062, 1
        %1066 = vrot.lane.b32.xlu0 %v1065, 64
        %v1067 = vpop.permute.xlu0 %1066
        %v1069 = vadd.f32 %v1062, %v1067
        %v1071 = vrot.slane %v1063, 2
        %v1073 = vadd.f32 %v1069, %v1071
        %v1074 = vld [vmem:[%s6] sm:$0x1]
        %v1076 = vperm.slane %v1074, 0
        %v1078 = vadd.f32 %v1073, %v1076
        %v1079 = vmul.f32 %v1078, 0.01
        %v1080 = vmax.f32 %v1078, %v1079
        %v1081 = vld [vmem:[#allocation9] sm:$0xff]
        %v1082 = vld [vmem:[#allocation9 + $0x8] sm:$0xff]
        %v1083 = vld [vmem:[#allocation9 + $0x10] sm:$0xff]
        %v1084 = vld [vmem:[#allocation9 + $0x18] sm:$0xff]
        %v1085 = vld [vmem:[#allocation9 + $0x20] sm:$0xff]
        %v1086 = vld [vmem:[#allocation9 + $0x28] sm:$0xff]
        %v1087 = vld [vmem:[#allocation9 + $0x30] sm:$0xff]
        %v1088 = vld [vmem:[#allocation9 + $0x38] sm:$0xff]
        %v1089 = vld [vmem:[#allocation9 + $0x40] sm:$0xff]
        %v1090 = vld [vmem:[#allocation9 + $0x48] sm:$0xff]
        %v1091 = vld [vmem:[#allocation9 + $0x50] sm:$0xff]
        %v1092 = vld [vmem:[#allocation9 + $0x58] sm:$0xff]
        %v1093 = vld [vmem:[#allocation9 + $0x60] sm:$0xff]
        %v1094 = vld [vmem:[#allocation9 + $0x68] sm:$0xff]
        %v1095 = vld [vmem:[#allocation9 + $0x70] sm:$0xff]
        %v1096 = vld [vmem:[#allocation9 + $0x78] sm:$0xff]
        %v1098 = vsel %vm987, %v1080, 0
        %1100 = vmatpush.msra.mxu0 0.0
        %1101 = vmatpush.msra.mxu0 0.0
        %1102 = vmatpush.msra.mxu0 0.0
        %1103 = vmatpush.msra.mxu0 0.0
        %1104 = vmatpush.msra.mxu0 0.0
        %1105 = vmatpush.msra.mxu0 0.0
        %1106 = vmatpush.msra.mxu0 0.0
        %1107 = vmatpush.msra.mxu0 0.0
        %1108 = vmatpush.msra.mxu0 %v1095
        %1109 = vmatpush.msra.mxu0 %v1093
        %1110 = vmatpush.msra.mxu0 %v1091
        %1111 = vmatpush.msra.mxu0 %v1089
        %1112 = vmatpush.msra.mxu0 %v1087
        %1113 = vmatpush.msra.mxu0 %v1085
        %1114 = vmatpush.msra.mxu0 %v1083
        %1115 = vmatpush.msra.mxu0 %v1081
        %1116 = vmatmul.f32.gmra.mxu0 %v1098
        %v1117 = vpop.f32.mrf.mxu0
        %v1118 = vadd.f32 0.0, %v1117
        %1119 = vdwg.mxu0
        %1120 = vmatpush.msra.mxu0 0.0
        %1121 = vmatpush.msra.mxu0 0.0
        %1122 = vmatpush.msra.mxu0 0.0
        %1123 = vmatpush.msra.mxu0 0.0
        %1124 = vmatpush.msra.mxu0 0.0
        %1125 = vmatpush.msra.mxu0 0.0
        %1126 = vmatpush.msra.mxu0 0.0
        %1127 = vmatpush.msra.mxu0 0.0
        %1128 = vmatpush.msra.mxu0 %v1096
        %1129 = vmatpush.msra.mxu0 %v1094
        %1130 = vmatpush.msra.mxu0 %v1092
        %1131 = vmatpush.msra.mxu0 %v1090
        %1132 = vmatpush.msra.mxu0 %v1088
        %1133 = vmatpush.msra.mxu0 %v1086
        %1134 = vmatpush.msra.mxu0 %v1084
        %1135 = vmatpush.msra.mxu0 %v1082
        %1136 = vmatmul.f32.gmra.mxu0 %v1098
        %v1137 = vpop.f32.mrf.mxu0
        %v1138 = vadd.f32 0.0, %v1137
        %1139 = vdwg.mxu0
        %v1142 = vrot.slane %v1118, 7
        %v1143 = vrot.slane %v1138, 7
        %v1146 = vsel %vm960, 0.0, %v1142
        %v1147 = vsel %vm960, 0.0, %v1143
        %v1148 = vsel %vm849, %v1146, 0.0
        %v1149 = vsel %vm849, %v1147, 0.0
        %v1151 = vrot.slane %v1148, 1
        %1152 = vrot.lane.b32.xlu0 %v1151, 64
        %v1153 = vpop.permute.xlu0 %1152
        %v1155 = vadd.f32 %v1148, %v1153
        %v1157 = vrot.slane %v1149, 2
        %v1159 = vadd.f32 %v1155, %v1157
        %v1160 = vld [vmem:[%s8] sm:$0x1]
        %v1162 = vperm.slane %v1160, 0
        %v1164 = vadd.f32 %v1159, %v1162
        %v1165 = vadd.f32 %v992, %v1164
        %v1166 = vmul.f32 %v1165, 0.01
        %v1167 = vmax.f32 %v1165, %v1166
        %v1168 = vld [vmem:[#allocation10] sm:$0xff]
        %v1169 = vld [vmem:[#allocation10 + $0x8] sm:$0xff]
        %v1170 = vld [vmem:[#allocation10 + $0x10] sm:$0xff]
        %v1171 = vld [vmem:[#allocation10 + $0x18] sm:$0xff]
        %v1172 = vld [vmem:[#allocation10 + $0x20] sm:$0xff]
        %v1173 = vld [vmem:[#allocation10 + $0x28] sm:$0xff]
        %v1174 = vld [vmem:[#allocation10 + $0x30] sm:$0xff]
        %v1175 = vld [vmem:[#allocation10 + $0x38] sm:$0xff]
        %v1176 = vld [vmem:[#allocation10 + $0x40] sm:$0xff]
        %v1177 = vld [vmem:[#allocation10 + $0x48] sm:$0xff]
        %v1178 = vld [vmem:[#allocation10 + $0x50] sm:$0xff]
        %v1179 = vld [vmem:[#allocation10 + $0x58] sm:$0xff]
        %v1180 = vld [vmem:[#allocation10 + $0x60] sm:$0xff]
        %v1181 = vld [vmem:[#allocation10 + $0x68] sm:$0xff]
        %v1182 = vld [vmem:[#allocation10 + $0x70] sm:$0xff]
        %v1183 = vld [vmem:[#allocation10 + $0x78] sm:$0xff]
        %v1185 = vsel %vm987, %v1167, 0
        %1187 = vmatpush.msra.mxu0 0.0
        %1188 = vmatpush.msra.mxu0 0.0
        %1189 = vmatpush.msra.mxu0 0.0
        %1190 = vmatpush.msra.mxu0 0.0
        %1191 = vmatpush.msra.mxu0 0.0
        %1192 = vmatpush.msra.mxu0 0.0
        %1193 = vmatpush.msra.mxu0 0.0
        %1194 = vmatpush.msra.mxu0 0.0
        %1195 = vmatpush.msra.mxu0 %v1182
        %1196 = vmatpush.msra.mxu0 %v1180
        %1197 = vmatpush.msra.mxu0 %v1178
        %1198 = vmatpush.msra.mxu0 %v1176
        %1199 = vmatpush.msra.mxu0 %v1174
        %1200 = vmatpush.msra.mxu0 %v1172
        %1201 = vmatpush.msra.mxu0 %v1170
        %1202 = vmatpush.msra.mxu0 %v1168
        %1203 = vmatmul.f32.gmra.mxu0 %v1185
        %v1204 = vpop.f32.mrf.mxu0
        %v1205 = vadd.f32 0.0, %v1204
        %1206 = vdwg.mxu0
        %1207 = vmatpush.msra.mxu0 0.0
        %1208 = vmatpush.msra.mxu0 0.0
        %1209 = vmatpush.msra.mxu0 0.0
        %1210 = vmatpush.msra.mxu0 0.0
        %1211 = vmatpush.msra.mxu0 0.0
        %1212 = vmatpush.msra.mxu0 0.0
        %1213 = vmatpush.msra.mxu0 0.0
        %1214 = vmatpush.msra.mxu0 0.0
        %1215 = vmatpush.msra.mxu0 %v1183
        %1216 = vmatpush.msra.mxu0 %v1181
        %1217 = vmatpush.msra.mxu0 %v1179
        %1218 = vmatpush.msra.mxu0 %v1177
        %1219 = vmatpush.msra.mxu0 %v1175
        %1220 = vmatpush.msra.mxu0 %v1173
        %1221 = vmatpush.msra.mxu0 %v1171
        %1222 = vmatpush.msra.mxu0 %v1169
        %1223 = vmatmul.f32.gmra.mxu0 %v1185
        %v1224 = vpop.f32.mrf.mxu0
        %v1225 = vadd.f32 0.0, %v1224
        %1226 = vdwg.mxu0
        %v1229 = vrot.slane %v1205, 7
        %v1230 = vrot.slane %v1225, 7
        %v1233 = vsel %vm960, 0.0, %v1229
        %v1234 = vsel %vm960, 0.0, %v1230
        %v1235 = vsel %vm849, %v1233, 0.0
        %v1236 = vsel %vm849, %v1234, 0.0
        %v1238 = vrot.slane %v1235, 1
        %1239 = vrot.lane.b32.xlu0 %v1238, 64
        %v1240 = vpop.permute.xlu0 %1239
        %v1242 = vadd.f32 %v1235, %v1240
        %v1244 = vrot.slane %v1236, 2
        %v1246 = vadd.f32 %v1242, %v1244
        %v1247 = vld [vmem:[%s10] sm:$0x1]
        %v1249 = vperm.slane %v1247, 0
        %v1251 = vadd.f32 %v1246, %v1249
        %v1252 = vmul.f32 %v1251, 0.01
        %v1253 = vmax.f32 %v1251, %v1252
        %v1254 = vld [vmem:[#allocation12] sm:$0xff]
        %v1255 = vld [vmem:[#allocation12 + $0x8] sm:$0xff]
        %v1256 = vld [vmem:[#allocation12 + $0x10] sm:$0xff]
        %v1257 = vld [vmem:[#allocation12 + $0x18] sm:$0xff]
        %v1258 = vld [vmem:[#allocation12 + $0x20] sm:$0xff]
        %v1259 = vld [vmem:[#allocation12 + $0x28] sm:$0xff]
        %v1260 = vld [vmem:[#allocation12 + $0x30] sm:$0xff]
        %v1261 = vld [vmem:[#allocation12 + $0x38] sm:$0xff]
        %v1262 = vld [vmem:[#allocation12 + $0x40] sm:$0xff]
        %v1263 = vld [vmem:[#allocation12 + $0x48] sm:$0xff]
        %v1264 = vld [vmem:[#allocation12 + $0x50] sm:$0xff]
        %v1265 = vld [vmem:[#allocation12 + $0x58] sm:$0xff]
        %v1266 = vld [vmem:[#allocation12 + $0x60] sm:$0xff]
        %v1267 = vld [vmem:[#allocation12 + $0x68] sm:$0xff]
        %v1268 = vld [vmem:[#allocation12 + $0x70] sm:$0xff]
        %v1269 = vld [vmem:[#allocation12 + $0x78] sm:$0xff]
        %v1271 = vsel %vm987, %v1253, 0
        %1273 = vmatpush.msra.mxu0 0.0
        %1274 = vmatpush.msra.mxu0 0.0
        %1275 = vmatpush.msra.mxu0 0.0
        %1276 = vmatpush.msra.mxu0 0.0
        %1277 = vmatpush.msra.mxu0 0.0
        %1278 = vmatpush.msra.mxu0 0.0
        %1279 = vmatpush.msra.mxu0 0.0
        %1280 = vmatpush.msra.mxu0 0.0
        %1281 = vmatpush.msra.mxu0 %v1268
        %1282 = vmatpush.msra.mxu0 %v1266
        %1283 = vmatpush.msra.mxu0 %v1264
        %1284 = vmatpush.msra.mxu0 %v1262
        %1285 = vmatpush.msra.mxu0 %v1260
        %1286 = vmatpush.msra.mxu0 %v1258
        %1287 = vmatpush.msra.mxu0 %v1256
        %1288 = vmatpush.msra.mxu0 %v1254
        %1289 = vmatmul.f32.gmra.mxu0 %v1271
        %v1290 = vpop.f32.mrf.mxu0
        %v1291 = vadd.f32 0.0, %v1290
        %1292 = vdwg.mxu0
        %1293 = vmatpush.msra.mxu0 0.0
        %1294 = vmatpush.msra.mxu0 0.0
        %1295 = vmatpush.msra.mxu0 0.0
        %1296 = vmatpush.msra.mxu0 0.0
        %1297 = vmatpush.msra.mxu0 0.0
        %1298 = vmatpush.msra.mxu0 0.0
        %1299 = vmatpush.msra.mxu0 0.0
        %1300 = vmatpush.msra.mxu0 0.0
        %1301 = vmatpush.msra.mxu0 %v1269
        %1302 = vmatpush.msra.mxu0 %v1267
        %1303 = vmatpush.msra.mxu0 %v1265
        %1304 = vmatpush.msra.mxu0 %v1263
        %1305 = vmatpush.msra.mxu0 %v1261
        %1306 = vmatpush.msra.mxu0 %v1259
        %1307 = vmatpush.msra.mxu0 %v1257
        %1308 = vmatpush.msra.mxu0 %v1255
        %1309 = vmatmul.f32.gmra.mxu0 %v1271
        %v1310 = vpop.f32.mrf.mxu0
        %v1311 = vadd.f32 0.0, %v1310
        %1312 = vdwg.mxu0
        %v1315 = vrot.slane %v1291, 7
        %v1316 = vrot.slane %v1311, 7
        %v1319 = vsel %vm960, 0.0, %v1315
        %v1320 = vsel %vm960, 0.0, %v1316
        %v1321 = vsel %vm849, %v1319, 0.0
        %v1322 = vsel %vm849, %v1320, 0.0
        %v1324 = vrot.slane %v1321, 1
        %1325 = vrot.lane.b32.xlu0 %v1324, 64
        %v1326 = vpop.permute.xlu0 %1325
        %v1328 = vadd.f32 %v1321, %v1326
        %v1330 = vrot.slane %v1322, 2
        %v1332 = vadd.f32 %v1328, %v1330
        %v1333 = vld [vmem:[%s12] sm:$0x1]
        %v1335 = vperm.slane %v1333, 0
        %v1337 = vadd.f32 %v1332, %v1335
        %v1338 = vadd.f32 %v1165, %v1337
        %v1339 = vld [vmem:[#allocation13] sm:$0xff]
        %v1340 = vld [vmem:[#allocation13 + $0x8] sm:$0xff]
        %v1341 = vld [vmem:[#allocation13 + $0x10] sm:$0xff]
        %v1342 = vld [vmem:[#allocation13 + $0x18] sm:$0xff]
        %v1343 = vld [vmem:[#allocation13 + $0x20] sm:$0xff]
        %v1344 = vld [vmem:[#allocation13 + $0x28] sm:$0xff]
        %v1345 = vld [vmem:[#allocation13 + $0x30] sm:$0xff]
        %v1346 = vld [vmem:[#allocation13 + $0x38] sm:$0xff]
        %v1347 = vld [vmem:[#allocation13 + $0x40] sm:$0xff]
        %v1348 = vld [vmem:[#allocation13 + $0x48] sm:$0xff]
        %v1349 = vld [vmem:[#allocation13 + $0x50] sm:$0xff]
        %v1350 = vld [vmem:[#allocation13 + $0x58] sm:$0xff]
        %v1351 = vld [vmem:[#allocation13 + $0x60] sm:$0xff]
        %v1352 = vld [vmem:[#allocation13 + $0x68] sm:$0xff]
        %v1353 = vld [vmem:[#allocation13 + $0x70] sm:$0xff]
        %v1354 = vld [vmem:[#allocation13 + $0x78] sm:$0xff]
        %v1355 = vld [vmem:[#allocation13 + $0x80] sm:$0xff]
        %v1356 = vld [vmem:[#allocation13 + $0x88] sm:$0xff]
        %v1357 = vld [vmem:[#allocation13 + $0x90] sm:$0xff]
        %v1358 = vld [vmem:[#allocation13 + $0x98] sm:$0xff]
        %v1359 = vld [vmem:[#allocation13 + $0xa0] sm:$0xff]
        %v1360 = vld [vmem:[#allocation13 + $0xa8] sm:$0xff]
        %v1361 = vld [vmem:[#allocation13 + $0xb0] sm:$0xff]
        %v1362 = vld [vmem:[#allocation13 + $0xb8] sm:$0xff]
        %v1364 = vsel %vm987, %v1338, 0
        %1366 = vmatpush.msra.mxu0 0.0
        %1367 = vmatpush.msra.mxu0 0.0
        %1368 = vmatpush.msra.mxu0 0.0
        %1369 = vmatpush.msra.mxu0 0.0
        %1370 = vmatpush.msra.mxu0 0.0
        %1371 = vmatpush.msra.mxu0 0.0
        %1372 = vmatpush.msra.mxu0 0.0
        %1373 = vmatpush.msra.mxu0 0.0
        %1374 = vmatpush.msra.mxu0 %v1360
        %1375 = vmatpush.msra.mxu0 %v1357
        %1376 = vmatpush.msra.mxu0 %v1354
        %1377 = vmatpush.msra.mxu0 %v1351
        %1378 = vmatpush.msra.mxu0 %v1348
        %1379 = vmatpush.msra.mxu0 %v1345
        %1380 = vmatpush.msra.mxu0 %v1342
        %1381 = vmatpush.msra.mxu0 %v1339
        %1382 = vmatmul.f32.gmra.mxu0 %v1364
        %v1383 = vpop.f32.mrf.mxu0
        %v1384 = vadd.f32 0.0, %v1383
        %1385 = vdwg.mxu0
        %1386 = vmatpush.msra.mxu0 0.0
        %1387 = vmatpush.msra.mxu0 0.0
        %1388 = vmatpush.msra.mxu0 0.0
        %1389 = vmatpush.msra.mxu0 0.0
        %1390 = vmatpush.msra.mxu0 0.0
        %1391 = vmatpush.msra.mxu0 0.0
        %1392 = vmatpush.msra.mxu0 0.0
        %1393 = vmatpush.msra.mxu0 0.0
        %1394 = vmatpush.msra.mxu0 %v1361
        %1395 = vmatpush.msra.mxu0 %v1358
        %1396 = vmatpush.msra.mxu0 %v1355
        %1397 = vmatpush.msra.mxu0 %v1352
        %1398 = vmatpush.msra.mxu0 %v1349
        %1399 = vmatpush.msra.mxu0 %v1346
        %1400 = vmatpush.msra.mxu0 %v1343
        %1401 = vmatpush.msra.mxu0 %v1340
        %1402 = vmatmul.f32.gmra.mxu0 %v1364
        %v1403 = vpop.f32.mrf.mxu0
        %v1404 = vadd.f32 0.0, %v1403
        %1405 = vdwg.mxu0
        %1406 = vmatpush.msra.mxu0 0.0
        %1407 = vmatpush.msra.mxu0 0.0
        %1408 = vmatpush.msra.mxu0 0.0
        %1409 = vmatpush.msra.mxu0 0.0
        %1410 = vmatpush.msra.mxu0 0.0
        %1411 = vmatpush.msra.mxu0 0.0
        %1412 = vmatpush.msra.mxu0 0.0
        %1413 = vmatpush.msra.mxu0 0.0
        %1414 = vmatpush.msra.mxu0 %v1362
        %1415 = vmatpush.msra.mxu0 %v1359
        %1416 = vmatpush.msra.mxu0 %v1356
        %1417 = vmatpush.msra.mxu0 %v1353
        %1418 = vmatpush.msra.mxu0 %v1350
        %1419 = vmatpush.msra.mxu0 %v1347
        %1420 = vmatpush.msra.mxu0 %v1344
        %1421 = vmatpush.msra.mxu0 %v1341
        %1422 = vmatmul.f32.gmra.mxu0 %v1364
        %v1423 = vpop.f32.mrf.mxu0
        %v1424 = vadd.f32 0.0, %v1423
        %1425 = vdwg.mxu0
        %v1429 = vrot.slane %v1384, 7
        %v1430 = vrot.slane %v1404, 7
        %v1431 = vrot.slane %v1424, 7
        %v1435 = vsel %vm960, 0.0, %v1429
        %v1436 = vsel %vm960, 0.0, %v1430
        %v1437 = vsel %vm960, 0.0, %v1431
        %v1438 = vsel %vm849, %v1435, 0.0
        %v1439 = vsel %vm849, %v1436, 0.0
        %v1440 = vsel %vm849, %v1437, 0.0
        %v1442 = vrot.slane %v1439, 1
        %v1444 = vadd.f32 %v1438, %v1442
        %v1446 = vrot.slane %v1440, 2
        %v1448 = vadd.f32 %v1444, %v1446
        %v1449 = vld [vmem:[%s14] sm:$0x1]
        %v1451 = vperm.slane %v1449, 0
        %v1453 = vadd.f32 %v1448, %v1451
        %v1454 = vmax.f32 %v1453, 0.0
        %v1455 = vld [vmem:[#allocation15] sm:$0xff]
        %v1456 = vld [vmem:[#allocation15 + $0x8] sm:$0xff]
        %v1457 = vld [vmem:[#allocation15 + $0x10] sm:$0xff]
        %v1458 = vld [vmem:[#allocation15 + $0x18] sm:$0xff]
        %v1459 = vld [vmem:[#allocation15 + $0x20] sm:$0xff]
        %v1460 = vld [vmem:[#allocation15 + $0x28] sm:$0xff]
        %v1461 = vld [vmem:[#allocation15 + $0x30] sm:$0xff]
        %v1462 = vld [vmem:[#allocation15 + $0x38] sm:$0xff]
        %v1463 = vld [vmem:[#allocation15 + $0x40] sm:$0xff]
        %v1464 = vld [vmem:[#allocation15 + $0x48] sm:$0xff]
        %v1465 = vld [vmem:[#allocation15 + $0x50] sm:$0xff]
        %v1466 = vld [vmem:[#allocation15 + $0x58] sm:$0xff]
        %v1467 = vld [vmem:[#allocation15 + $0x60] sm:$0xff]
        %v1468 = vld [vmem:[#allocation15 + $0x68] sm:$0xff]
        %v1469 = vld [vmem:[#allocation15 + $0x70] sm:$0xff]
        %v1470 = vld [vmem:[#allocation15 + $0x78] sm:$0xff]
        %v1471 = vld [vmem:[#allocation15 + $0x80] sm:$0xff]
        %v1472 = vld [vmem:[#allocation15 + $0x88] sm:$0xff]
        %v1473 = vld [vmem:[#allocation15 + $0x90] sm:$0xff]
        %v1474 = vld [vmem:[#allocation15 + $0x98] sm:$0xff]
        %v1475 = vld [vmem:[#allocation15 + $0xa0] sm:$0xff]
        %v1476 = vld [vmem:[#allocation15 + $0xa8] sm:$0xff]
        %v1477 = vld [vmem:[#allocation15 + $0xb0] sm:$0xff]
        %v1478 = vld [vmem:[#allocation15 + $0xb8] sm:$0xff]
        %v1479 = vld [vmem:[#allocation15 + $0xc0] sm:$0xff]
        %v1480 = vld [vmem:[#allocation15 + $0xc8] sm:$0xff]
        %v1481 = vld [vmem:[#allocation15 + $0xd0] sm:$0xff]
        %v1482 = vld [vmem:[#allocation15 + $0xd8] sm:$0xff]
        %v1483 = vld [vmem:[#allocation15 + $0xe0] sm:$0xff]
        %v1484 = vld [vmem:[#allocation15 + $0xe8] sm:$0xff]
        %v1485 = vld [vmem:[#allocation15 + $0xf0] sm:$0xff]
        %v1486 = vld [vmem:[#allocation15 + $0xf8] sm:$0xff]
        %v1487 = vld [vmem:[#allocation15 + $0x100] sm:$0xff]
        %v1488 = vld [vmem:[#allocation15 + $0x108] sm:$0xff]
        %v1489 = vld [vmem:[#allocation15 + $0x110] sm:$0xff]
        %v1490 = vld [vmem:[#allocation15 + $0x118] sm:$0xff]
        %v1491 = vld [vmem:[#allocation15 + $0x120] sm:$0xff]
        %v1492 = vld [vmem:[#allocation15 + $0x128] sm:$0xff]
        %v1493 = vld [vmem:[#allocation15 + $0x130] sm:$0xff]
        %v1494 = vld [vmem:[#allocation15 + $0x138] sm:$0xff]
        %v1495 = vld [vmem:[#allocation15 + $0x140] sm:$0xff]
        %v1496 = vld [vmem:[#allocation15 + $0x148] sm:$0xff]
        %v1497 = vld [vmem:[#allocation15 + $0x150] sm:$0xff]
        %v1498 = vld [vmem:[#allocation15 + $0x158] sm:$0xff]
        %v1499 = vld [vmem:[#allocation15 + $0x160] sm:$0xff]
        %v1500 = vld [vmem:[#allocation15 + $0x168] sm:$0xff]
        %v1501 = vld [vmem:[#allocation15 + $0x170] sm:$0xff]
        %v1502 = vld [vmem:[#allocation15 + $0x178] sm:$0xff]
        %1503 = vmatpush.msra.mxu0 %v1500
        %1504 = vmatpush.msra.mxu0 %v1497
        %1505 = vmatpush.msra.mxu0 %v1494
        %1506 = vmatpush.msra.mxu0 %v1491
        %1507 = vmatpush.msra.mxu0 %v1488
        %1508 = vmatpush.msra.mxu0 %v1485
        %1509 = vmatpush.msra.mxu0 %v1482
        %1510 = vmatpush.msra.mxu0 %v1479
        %1511 = vmatpush.msra.mxu0 %v1476
        %1512 = vmatpush.msra.mxu0 %v1473
        %1513 = vmatpush.msra.mxu0 %v1470
        %1514 = vmatpush.msra.mxu0 %v1467
        %1515 = vmatpush.msra.mxu0 %v1464
        %1516 = vmatpush.msra.mxu0 %v1461
        %1517 = vmatpush.msra.mxu0 %v1458
        %1518 = vmatpush.msra.mxu0 %v1455
        %1519 = vmatmul.f32.gmra.mxu0 %v1454
        %v1520 = vpop.f32.mrf.mxu0
        %v1521 = vadd.f32 0.0, %v1520
        %1522 = vdwg.mxu0
        %1523 = vmatpush.msra.mxu0 %v1501
        %1524 = vmatpush.msra.mxu0 %v1498
        %1525 = vmatpush.msra.mxu0 %v1495
        %1526 = vmatpush.msra.mxu0 %v1492
        %1527 = vmatpush.msra.mxu0 %v1489
        %1528 = vmatpush.msra.mxu0 %v1486
        %1529 = vmatpush.msra.mxu0 %v1483
        %1530 = vmatpush.msra.mxu0 %v1480
        %1531 = vmatpush.msra.mxu0 %v1477
        %1532 = vmatpush.msra.mxu0 %v1474
        %1533 = vmatpush.msra.mxu0 %v1471
        %1534 = vmatpush.msra.mxu0 %v1468
        %1535 = vmatpush.msra.mxu0 %v1465
        %1536 = vmatpush.msra.mxu0 %v1462
        %1537 = vmatpush.msra.mxu0 %v1459
        %1538 = vmatpush.msra.mxu0 %v1456
        %1539 = vmatmul.f32.gmra.mxu0 %v1454
        %v1540 = vpop.f32.mrf.mxu0
        %v1541 = vadd.f32 0.0, %v1540
        %1542 = vdwg.mxu0
        %1543 = vmatpush.msra.mxu0 %v1502
        %1544 = vmatpush.msra.mxu0 %v1499
        %1545 = vmatpush.msra.mxu0 %v1496
        %1546 = vmatpush.msra.mxu0 %v1493
        %1547 = vmatpush.msra.mxu0 %v1490
        %1548 = vmatpush.msra.mxu0 %v1487
        %1549 = vmatpush.msra.mxu0 %v1484
        %1550 = vmatpush.msra.mxu0 %v1481
        %1551 = vmatpush.msra.mxu0 %v1478
        %1552 = vmatpush.msra.mxu0 %v1475
        %1553 = vmatpush.msra.mxu0 %v1472
        %1554 = vmatpush.msra.mxu0 %v1469
        %1555 = vmatpush.msra.mxu0 %v1466
        %1556 = vmatpush.msra.mxu0 %v1463
        %1557 = vmatpush.msra.mxu0 %v1460
        %1558 = vmatpush.msra.mxu0 %v1457
        %1559 = vmatmul.f32.gmra.mxu0 %v1454
        %v1560 = vpop.f32.mrf.mxu0
        %v1561 = vadd.f32 0.0, %v1560
        %1562 = vdwg.mxu0
        %v1566 = vrot.slane %v1521, 7
        %v1567 = vrot.slane %v1541, 7
        %v1568 = vrot.slane %v1561, 7
        %v1572 = vsel %vm960, 0.0, %v1566
        %v1573 = vsel %vm960, 0.0, %v1567
        %v1574 = vsel %vm960, 0.0, %v1568
        %v1575 = vsel %vm849, %v1572, 0.0
        %v1576 = vsel %vm849, %v1573, 0.0
        %v1577 = vsel %vm849, %v1574, 0.0
        %v1579 = vrot.slane %v1576, 1
        %v1581 = vadd.f32 %v1575, %v1579
        %v1583 = vrot.slane %v1577, 2
        %v1585 = vadd.f32 %v1581, %v1583
        %v1586 = vld [vmem:[%s16] sm:$0x1]
        %v1588 = vperm.slane %v1586, 0
        %v1590 = vadd.f32 %v1585, %v1588
        %v1591 = vmax.f32 %v1590, 0.0
        %v1592 = vld [vmem:[#allocation16] sm:$0xff]
        %v1593 = vld [vmem:[#allocation16 + $0x8] sm:$0xff]
        %v1594 = vld [vmem:[#allocation16 + $0x10] sm:$0xff]
        %v1595 = vld [vmem:[#allocation16 + $0x18] sm:$0xff]
        %v1596 = vld [vmem:[#allocation16 + $0x20] sm:$0xff]
        %v1597 = vld [vmem:[#allocation16 + $0x28] sm:$0xff]
        %v1598 = vld [vmem:[#allocation16 + $0x30] sm:$0xff]
        %v1599 = vld [vmem:[#allocation16 + $0x38] sm:$0xff]
        %v1600 = vld [vmem:[#allocation16 + $0x40] sm:$0xff]
        %v1601 = vld [vmem:[#allocation16 + $0x48] sm:$0xff]
        %v1602 = vld [vmem:[#allocation16 + $0x50] sm:$0xff]
        %v1603 = vld [vmem:[#allocation16 + $0x58] sm:$0xff]
        %v1604 = vld [vmem:[#allocation16 + $0x60] sm:$0xff]
        %v1605 = vld [vmem:[#allocation16 + $0x68] sm:$0xff]
        %v1606 = vld [vmem:[#allocation16 + $0x70] sm:$0xff]
        %v1607 = vld [vmem:[#allocation16 + $0x78] sm:$0xff]
        %v1608 = vld [vmem:[#allocation16 + $0x80] sm:$0xff]
        %v1609 = vld [vmem:[#allocation16 + $0x88] sm:$0xff]
        %v1610 = vld [vmem:[#allocation16 + $0x90] sm:$0xff]
        %v1611 = vld [vmem:[#allocation16 + $0x98] sm:$0xff]
        %v1612 = vld [vmem:[#allocation16 + $0xa0] sm:$0xff]
        %v1613 = vld [vmem:[#allocation16 + $0xa8] sm:$0xff]
        %v1614 = vld [vmem:[#allocation16 + $0xb0] sm:$0xff]
        %v1615 = vld [vmem:[#allocation16 + $0xb8] sm:$0xff]
        %v1616 = vld [vmem:[#allocation16 + $0xc0] sm:$0xff]
        %v1617 = vld [vmem:[#allocation16 + $0xc8] sm:$0xff]
        %v1618 = vld [vmem:[#allocation16 + $0xd0] sm:$0xff]
        %v1619 = vld [vmem:[#allocation16 + $0xd8] sm:$0xff]
        %v1620 = vld [vmem:[#allocation16 + $0xe0] sm:$0xff]
        %v1621 = vld [vmem:[#allocation16 + $0xe8] sm:$0xff]
        %v1622 = vld [vmem:[#allocation16 + $0xf0] sm:$0xff]
        %v1623 = vld [vmem:[#allocation16 + $0xf8] sm:$0xff]
        %v1624 = vld [vmem:[#allocation16 + $0x100] sm:$0xff]
        %v1625 = vld [vmem:[#allocation16 + $0x108] sm:$0xff]
        %v1626 = vld [vmem:[#allocation16 + $0x110] sm:$0xff]
        %v1627 = vld [vmem:[#allocation16 + $0x118] sm:$0xff]
        %v1628 = vld [vmem:[#allocation16 + $0x120] sm:$0xff]
        %v1629 = vld [vmem:[#allocation16 + $0x128] sm:$0xff]
        %v1630 = vld [vmem:[#allocation16 + $0x130] sm:$0xff]
        %v1631 = vld [vmem:[#allocation16 + $0x138] sm:$0xff]
        %v1632 = vld [vmem:[#allocation16 + $0x140] sm:$0xff]
        %v1633 = vld [vmem:[#allocation16 + $0x148] sm:$0xff]
        %v1634 = vld [vmem:[#allocation16 + $0x150] sm:$0xff]
        %v1635 = vld [vmem:[#allocation16 + $0x158] sm:$0xff]
        %v1636 = vld [vmem:[#allocation16 + $0x160] sm:$0xff]
        %v1637 = vld [vmem:[#allocation16 + $0x168] sm:$0xff]
        %v1638 = vld [vmem:[#allocation16 + $0x170] sm:$0xff]
        %v1639 = vld [vmem:[#allocation16 + $0x178] sm:$0xff]
        %1640 = vmatpush.msra.mxu0 %v1637
        %1641 = vmatpush.msra.mxu0 %v1634
        %1642 = vmatpush.msra.mxu0 %v1631
        %1643 = vmatpush.msra.mxu0 %v1628
        %1644 = vmatpush.msra.mxu0 %v1625
        %1645 = vmatpush.msra.mxu0 %v1622
        %1646 = vmatpush.msra.mxu0 %v1619
        %1647 = vmatpush.msra.mxu0 %v1616
        %1648 = vmatpush.msra.mxu0 %v1613
        %1649 = vmatpush.msra.mxu0 %v1610
        %1650 = vmatpush.msra.mxu0 %v1607
        %1651 = vmatpush.msra.mxu0 %v1604
        %1652 = vmatpush.msra.mxu0 %v1601
        %1653 = vmatpush.msra.mxu0 %v1598
        %1654 = vmatpush.msra.mxu0 %v1595
        %1655 = vmatpush.msra.mxu0 %v1592
        %1656 = vmatmul.f32.gmra.mxu0 %v1591
        %v1657 = vpop.f32.mrf.mxu0
        %v1658 = vadd.f32 0.0, %v1657
        %1659 = vdwg.mxu0
        %1660 = vmatpush.msra.mxu0 %v1638
        %1661 = vmatpush.msra.mxu0 %v1635
        %1662 = vmatpush.msra.mxu0 %v1632
        %1663 = vmatpush.msra.mxu0 %v1629
        %1664 = vmatpush.msra.mxu0 %v1626
        %1665 = vmatpush.msra.mxu0 %v1623
        %1666 = vmatpush.msra.mxu0 %v1620
        %1667 = vmatpush.msra.mxu0 %v1617
        %1668 = vmatpush.msra.mxu0 %v1614
        %1669 = vmatpush.msra.mxu0 %v1611
        %1670 = vmatpush.msra.mxu0 %v1608
        %1671 = vmatpush.msra.mxu0 %v1605
        %1672 = vmatpush.msra.mxu0 %v1602
        %1673 = vmatpush.msra.mxu0 %v1599
        %1674 = vmatpush.msra.mxu0 %v1596
        %1675 = vmatpush.msra.mxu0 %v1593
        %1676 = vmatmul.f32.gmra.mxu0 %v1591
        %v1677 = vpop.f32.mrf.mxu0
        %v1678 = vadd.f32 0.0, %v1677
        %1679 = vdwg.mxu0
        %1680 = vmatpush.msra.mxu0 %v1639
        %1681 = vmatpush.msra.mxu0 %v1636
        %1682 = vmatpush.msra.mxu0 %v1633
        %1683 = vmatpush.msra.mxu0 %v1630
        %1684 = vmatpush.msra.mxu0 %v1627
        %1685 = vmatpush.msra.mxu0 %v1624
        %1686 = vmatpush.msra.mxu0 %v1621
        %1687 = vmatpush.msra.mxu0 %v1618
        %1688 = vmatpush.msra.mxu0 %v1615
        %1689 = vmatpush.msra.mxu0 %v1612
        %1690 = vmatpush.msra.mxu0 %v1609
        %1691 = vmatpush.msra.mxu0 %v1606
        %1692 = vmatpush.msra.mxu0 %v1603
        %1693 = vmatpush.msra.mxu0 %v1600
        %1694 = vmatpush.msra.mxu0 %v1597
        %1695 = vmatpush.msra.mxu0 %v1594
        %1696 = vmatmul.f32.gmra.mxu0 %v1591
        %v1697 = vpop.f32.mrf.mxu0
        %v1698 = vadd.f32 0.0, %v1697
        %1699 = vdwg.mxu0
        %v1703 = vrot.slane %v1658, 7
        %v1704 = vrot.slane %v1678, 7
        %v1705 = vrot.slane %v1698, 7
        %v1709 = vsel %vm960, 0.0, %v1703
        %v1710 = vsel %vm960, 0.0, %v1704
        %v1711 = vsel %vm960, 0.0, %v1705
        %v1712 = vsel %vm849, %v1709, 0.0
        %v1713 = vsel %vm849, %v1710, 0.0
        %v1714 = vsel %vm849, %v1711, 0.0
        %v1716 = vrot.slane %v1713, 1
        %v1718 = vadd.f32 %v1712, %v1716
        %v1720 = vrot.slane %v1714, 2
        %v1722 = vadd.f32 %v1718, %v1720
        %v1723 = vld [vmem:[%s18] sm:$0x1]
        %v1725 = vperm.slane %v1723, 0
        %v1727 = vadd.f32 %v1722, %v1725
        %v1728 = vmax.f32 %v1727, 0.0
        %1729 = vst [vmem:[%s728] sm:$0xf] %v1728
        %s1730 = sand.u32 %s450, 1
        %s1731 = scalar_lea.sflag [#allocation6], %s1730
        %s1732 = sand.u32 %s450, 1
        %s1733 = smul.addr %s1732, 4
        %s1734 = scalar_lea.vmem [#allocation18], %s1733
        // Predicated region
        $region129: #{tpu_custom_call.1} parent=95 // pred_check
          %p1735 = pneg %p460
        $region130: #{tpu_custom_call.1} parent=95 // pred_check_branch
          %1737 = sbr.rel (%p1735) target = $region132
        $region131: #{tpu_custom_call.1} parent=95 // pred_region
          %1739 = vsyncadd %s1731, 0
          %s1740 = smul.addr %s38, 4
          %s1741 = scalar_lea.hbm %s19, %s1740
          %s1743 = sshll.u32 %s1734, 4
          %s1744 = int_to_ptr.vmem [resolvable:$true] %s1743
          %s1745 = sshll.u32 %s1741, 4
          %s1746 = int_to_ptr.hbm [resolvable:$true] %s1745
          %1748 = dma.vmem_to_hbm [thread:$0]  %s1744, 64, %s1746, %s1731
        $region132: #{tpu_custom_call.1} parent=95 // pred_fallthru
          _
      $region96: #{tpu_custom_call.1} parent=5 // pred_fallthru
        _
      %p1749 = scmp.le.s32.totalorder 2, %s33
      // Predicated region
      $region133: #{tpu_custom_call.1} parent=5 // pred_check
        %p1750 = pneg %p1749
      $region134: #{tpu_custom_call.1} parent=5 // pred_check_branch
        %1752 = sbr.rel (%p1750) target = $region136
      $region135: #{tpu_custom_call.1} parent=5 // pred_region
        %s1753 = ssub.s32 %s33, 2
        // Predicated region
        $region137: #{tpu_custom_call.1} parent=135 // pred_check
          %p1754 = pneg %p466
        $region138: #{tpu_custom_call.1} parent=135 // pred_check_branch
          %1756 = sbr.rel (%p1754) target = $region140
        $region139: #{tpu_custom_call.1} parent=135 // pred_region
          %s1757 = sand.u32 %s451, 1
          %s1758 = scalar_lea.sflag [#allocation6], %s1757
          %s1759 = sand.u32 %s451, 1
          %s1760 = smul.addr %s1759, 4
          %s1761 = scalar_lea.vmem [#allocation18], %s1760
          %1763 = dma.done %s1758, 64
        $region140: #{tpu_custom_call.1} parent=135 // pred_fallthru
          _
      $region136: #{tpu_custom_call.1} parent=5 // pred_fallthru
        _
    $region6: #{tpu_custom_call.1} parent=1 // loop_footer
      %s37 = sadd.s32 1, %s33
    $region7: #{tpu_custom_call.1} parent=1 // loop_footer_branch
      %32 = sbr.rel target = $region3
    $region8: #{tpu_custom_call.1} parent=1 // loop_exit
      _
    %1764 = vsyncpa [#allocation5], 1
    %s1765 = scalar_lea.sflag [#allocation5], 1
    %1766 = vsyncpa %s1765, 1
    %1767 = vsyncpa [#allocation8], 1
    %1768 = vsyncpa [#allocation11], 1
    %1769 = vsyncpa [#allocation14], 1
    %1770 = vsyncpa [#allocation17], 1
    %1771 = vsyncpa [#allocation6], 1
    %s1772 = scalar_lea.sflag [#allocation6], 1
    %1773 = vsyncpa %s1772, 1

</llo_original>
